<compile_context>
chip_gen: v5e
topology: v5e:2x2
jax: 0.10.0
libtpu: 0.0.40
codegen_flags: <defaults>
</compile_context>

<pallas_src>
from functools import partial

import jax
import jax.numpy as jnp
from jax import lax
from jax.experimental import pallas as pl
from jax.experimental.pallas import tpu as pltpu


def _vmem_limit_bytes():
    """Per-generation VMEM budget: v5e/v6e have 128 MiB physical, v7x 64 MiB."""
    try:
        cap = pltpu.get_tpu_info().vmem_capacity_bytes
        return int(min(96 * 1024 * 1024, (cap * 3) // 4))
    except Exception:
        return 48 * 1024 * 1024  # safe on every generation


def _choose_tile(H, W):
    """Largest tile of whole output rows that is lane-dense (mult. of 128) <= 1024 px."""
    HW = H * W
    best = None
    for rows in range(1, H + 1):
        if H % rows:
            continue
        tb = rows * W
        if tb % 128 == 0 and tb <= 1024:
            best = tb
    if best is None:
        # TODO(synk): for deep Unet stages with HW < 128 (e.g. 8x8), fold the
        #             batch dim into the lane dim to keep stores lane-dense.
        best = HW
    return best, HW // best


def _conv_tile_fn(C_out, W, TB, T):
    """Returns f(x_ref, w_ref, t) -> (C_out, TB) f32 conv tile (no bias).

    x_ref : (1, C_in, (H+2)*W + 2) bf16 — image padded by one zero ROW top and
            bottom, flattened row-major, with one extra zero element front/back.
    w_ref : (9, C_out, C_in) bf16 — tap-major standardized weights.
    Tap (kh, kw) of output pixel p in the tile starting at row-aligned offset
    t*TB is simply x_flat[t*TB + p + kh*W + kw]; columns falling off the image
    (kw=0 at w=0, kw=2 at w=W-1) are zeroed with a per-lane mask.
    """

    def conv_tile(x_ref, w_ref, t):
        base = (t * TB) if T > 1 else 0   # fully static start when single-tile

        def ksum(kw):
            acc = jnp.zeros((C_out, TB), jnp.float32)
            for kh in range(3):  # 3 shifted lane windows + 3 MXU matmuls
                tap = x_ref[0, :, pl.ds(base + kh * W + kw, TB)]  # (C_in, TB)
                acc = acc + jnp.dot(w_ref[kh * 3 + kw], tap,
                                    preferred_element_type=jnp.float32)
            return acc

        col = lax.broadcasted_iota(jnp.int32, (1, TB), 1) % W
        out = ksum(1)                                      # kw=1: always valid
        out = out + jnp.where(col != 0, ksum(0), 0.0)      # kw=0: invalid at w=0
        out = out + jnp.where(col != W - 1, ksum(2), 0.0)  # kw=2: invalid at w=W-1
        return out

    return conv_tile


def _make_stats_kernel(C_out, W, TB, T):
    conv_tile = _conv_tile_fn(C_out, W, TB, T)

    def kernel(x_ref, w_ref, b_ref, stats_ref, sum_ref, sq_ref):
        t = pl.program_id(1)

        @pl.when(t == 0)
        def _init():
            sum_ref[...] = jnp.zeros_like(sum_ref)
            sq_ref[...] = jnp.zeros_like(sq_ref)

        tile = conv_tile(x_ref, w_ref, t) + b_ref[...]     # (C_out, TB) f32
        sum_ref[...] += tile                               # VPU adds only
        sq_ref[...] += tile * tile

        @pl.when(t == T - 1)
        def _finalize():                                   # one XLU reduce per image
            stats_ref[0, :, 0:1] = jnp.sum(sum_ref[...], axis=1, keepdims=True)
            stats_ref[0, :, 1:2] = jnp.sum(sq_ref[...], axis=1, keepdims=True)

    return kernel


def _make_norm_silu_kernel(C_out, W, TB, T):
    conv_tile = _conv_tile_fn(C_out, W, TB, T)

    def kernel(x_ref, w_ref, m_ref, a_ref, o_ref):
        t = pl.program_id(1)
        y = conv_tile(x_ref, w_ref, t) * m_ref[0] + a_ref[0]
        sig = pl.reciprocal(1.0 + jnp.exp(-y), approx=True)  # EUP exp + vrcp
        # TODO(synk): emit bf16 here if the next Unet layer consumes bf16.
        o_ref[0] = (y * sig).astype(o_ref.dtype)

    return kernel


@partial(jax.jit, static_argnames=("groups",))
def block_forward(x_nchw, weight, bias, gamma, beta, scale_shift=None, groups=8):
    """x_nchw: (N, C_in, H, W) f32; weight: (C_out, C_in, 3, 3) (PyTorch OIHW)."""
    N, C_in, H, W = x_nchw.shape
    C_out = weight.shape[0]
    HW = H * W
    assert C_out % groups == 0
    cg = C_out // groups

    # -- weight standardization (parameter prep; eps follows the INPUT dtype,
    #    exactly like the PyTorch module) --
    eps = 1e-5 if x_nchw.dtype == jnp.float32 else 1e-3
    w = weight.astype(jnp.float32)
    w_mean = jnp.mean(w, axis=(1, 2, 3), keepdims=True)
    w_var = jnp.mean((w - w_mean) ** 2, axis=(1, 2, 3), keepdims=True)
    w_std = (w - w_mean) * lax.rsqrt(w_var + eps)
    # tap-major: w9[kh*3+kw] is the (C_out, C_in) matrix of tap (kh, kw)
    w9 = jnp.transpose(w_std, (2, 3, 0, 1)).reshape(9, C_out, C_in)
    w9 = w9.astype(jnp.bfloat16)

    # -- activation prep (NO im2col): pad one zero row top/bottom, flatten
    #    row-major, add one zero element front/back so every tap is a shifted
    #    lane window of the same flattened image.  ~1x HBM read of x. --
    xhp = jnp.pad(x_nchw.astype(jnp.float32), ((0, 0), (0, 0), (1, 1), (0, 0)))
    xflat = xhp.reshape(N, C_in, (H + 2) * W)
    xflat = jnp.pad(xflat, ((0, 0), (0, 0), (1, 1))).astype(jnp.bfloat16)
    Lf = (H + 2) * W + 2

    bias_v = bias.reshape(C_out, 1).astype(jnp.float32)

    TB, T = _choose_tile(H, W)
    cparams = pltpu.CompilerParams(
        dimension_semantics=("parallel", "arbitrary"),
        vmem_limit_bytes=_vmem_limit_bytes(),
    )

    # ---- pass 1: conv(+bias) tiles -> per-channel [sum, sum_sq] stats ----
    stats = pl.pallas_call(
        _make_stats_kernel(C_out, W, TB, T),
        out_shape=jax.ShapeDtypeStruct((N, C_out, 2), jnp.float32),
        grid_spec=pltpu.PrefetchScalarGridSpec(
            num_scalar_prefetch=0,
            grid=(N, T),
            in_specs=[
                pl.BlockSpec((1, C_in, Lf), lambda n, t: (n, 0, 0)),      # x (resident/img)
                pl.BlockSpec((9, C_out, C_in), lambda n, t: (0, 0, 0)),   # taps
                pl.BlockSpec((C_out, 1), lambda n, t: (0, 0)),            # bias
            ],
            out_specs=pl.BlockSpec((1, C_out, 2), lambda n, t: (n, 0, 0)),
            scratch_shapes=[
                pltpu.VMEM((C_out, TB), jnp.float32),   # running sum
                pltpu.VMEM((C_out, TB), jnp.float32),   # running sum of squares
            ],
        ),
        compiler_params=cparams,
    )(xflat, w9, bias_v)

    # ---- tiny per-(image, channel) affine fold in plain JAX:
    #      GroupNorm + gamma/beta + optional (scale+1, shift)  ->  y*M + A ----
    cnt = float(cg * HW)
    mean_g = stats[..., 0].reshape(N, groups, cg).sum(-1) / cnt
    var_g = stats[..., 1].reshape(N, groups, cg).sum(-1) / cnt - mean_g * mean_g
    inv_g = lax.rsqrt(var_g + 1e-5)
    mean_c = jnp.repeat(mean_g, cg, axis=1)          # (N, C_out)
    inv_c = jnp.repeat(inv_g, cg, axis=1)

    if scale_shift is not None:
        scale, shift = scale_shift
        s1 = scale.reshape(N, C_out).astype(jnp.float32) + 1.0
        sh = shift.reshape(N, C_out).astype(jnp.float32)
    else:
        s1 = jnp.ones((N, C_out), jnp.float32)
        sh = jnp.zeros((N, C_out), jnp.float32)

    gamma_f = gamma.astype(jnp.float32)[None, :]
    beta_f = beta.astype(jnp.float32)[None, :]
    mul_c = inv_c * gamma_f * s1
    add_c = (bias.astype(jnp.float32)[None, :] - mean_c) * mul_c + beta_f * s1 + sh
    mul_c = mul_c.reshape(N, C_out, 1)
    add_c = add_c.reshape(N, C_out, 1)

    # ---- pass 2: recompute conv tile, fused normalize + scale/shift + SiLU,
    #      lane-dense per-tile output writes (pipelined writeback) ----
    out = pl.pallas_call(
        _make_norm_silu_kernel(C_out, W, TB, T),
        out_shape=jax.ShapeDtypeStruct((N, C_out, HW), jnp.float32),
        grid_spec=pltpu.PrefetchScalarGridSpec(
            num_scalar_prefetch=0,
            grid=(N, T),
            in_specs=[
                pl.BlockSpec((1, C_in, Lf), lambda n, t: (n, 0, 0)),
                pl.BlockSpec((9, C_out, C_in), lambda n, t: (0, 0, 0)),
                pl.BlockSpec((1, C_out, 1), lambda n, t: (n, 0, 0)),      # mul
                pl.BlockSpec((1, C_out, 1), lambda n, t: (n, 0, 0)),      # add
            ],
            out_specs=pl.BlockSpec((1, C_out, TB), lambda n, t: (n, 0, t)),
        ),
        compiler_params=cparams,
    )(xflat, w9, mul_c, add_c)

    return out.reshape(N, C_out, H, W)


def _reference(x_nchw, weight, bias, gamma, beta, scale_shift, groups):
    """Pure-JAX f32 reference of the PyTorch forward (validation only)."""
    eps = 1e-5
    w = weight
    m = w.mean(axis=(1, 2, 3), keepdims=True)
    v = ((w - m) ** 2).mean(axis=(1, 2, 3), keepdims=True)
    wn = (w - m) * lax.rsqrt(v + eps)
    y = lax.conv_general_dilated(
        x_nchw, wn, window_strides=(1, 1), padding=((1, 1), (1, 1)),
        dimension_numbers=('NCHW', 'OIHW', 'NCHW'),
        precision=lax.Precision.HIGHEST)
    y = y + bias[None, :, None, None]
    N, C, H, W = y.shape
    yg = y.reshape(N, groups, C // groups, H, W)
    gm = yg.mean(axis=(2, 3, 4), keepdims=True)
    gv = ((yg - gm) ** 2).mean(axis=(2, 3, 4), keepdims=True)
    yg = (yg - gm) * lax.rsqrt(gv + 1e-5)
    y = yg.reshape(N, C, H, W) * gamma[None, :, None, None] + beta[None, :, None, None]
    if scale_shift is not None:
        scale, shift = scale_shift
        y = y * (scale + 1.0) + shift
    return y * jax.nn.sigmoid(y)


if __name__ == "__main__":
    # dim=4 -> dim_out=32, groups=8, 16x16 spatial, batch=2 (megacore-friendly)
    N, C_in, C_out, H, W, G = 2, 4, 32, 16, 16, 8

    key = jax.random.PRNGKey(0)
    k_x, k_w, k_b, k_s, k_sh = jax.random.split(key, 5)

    x = jax.random.normal(k_x, (N, C_in, H, W), jnp.float32)
    weight = jax.random.normal(k_w, (C_out, C_in, 3, 3), jnp.float32) * 0.1
    bias = jax.random.normal(k_b, (C_out,), jnp.float32) * 0.05
    gamma = jnp.ones((C_out,), jnp.float32)   # nn.GroupNorm default init
    beta = jnp.zeros((C_out,), jnp.float32)
    scale = jax.random.normal(k_s, (N, C_out, 1, 1), jnp.float32) * 0.1
    shift = jax.random.normal(k_sh, (N, C_out, 1, 1), jnp.float32) * 0.1
    scale_shift = (scale, shift)

    out = block_forward(x, weight, bias, gamma, beta, scale_shift, groups=G)
    out = jax.block_until_ready(out)

    ref = _reference(x, weight, bias, gamma, beta, scale_shift, G)
    assert out.shape == (N, C_out, H, W)
    # bf16 MXU operands with f32 accumulation (native MXU path) => compare at a
    # bf16-conv tolerance against the full-f32 reference.
    assert jnp.allclose(out, ref, atol=2e-2, rtol=2e-2), (
        float(jnp.max(jnp.abs(out - ref))))

    print("KERNEL_OK")
</pallas_src>

<mosaic_0001>
module attributes {stable_mosaic.version = 11 : i64} {
  func.func @kernel(%arg0: i32, %arg1: i32, %arg2: memref<1x4x290xbf16, #tpu.memory_space<vmem>>, %arg3: memref<9x32x4xbf16, #tpu.memory_space<vmem>>, %arg4: memref<32x1xf32, #tpu.memory_space<vmem>>, %arg5: memref<1x32x2xf32, #tpu.memory_space<vmem>>, %arg6: memref<32x256xf32, #tpu.memory_space<vmem>>, %arg7: memref<32x256xf32, #tpu.memory_space<vmem>>) attributes {dimension_semantics = [#tpu.dimension_semantics<parallel>, #tpu.dimension_semantics<arbitrary>], iteration_bounds = array<i64: 2, 1>, scalar_prefetch = 0 : i64, scratch_operands = 2 : i64, tpu.core_type = #tpu.core_type<tc>, window_params = [{transform_indices = @transform_0, window_bounds = array<i64: 1, 4, 290>}, {pipeline_mode = #tpu.pipeline_mode<synchronous>, transform_indices = @transform_1, window_bounds = array<i64: 9, 32, 4>}, {pipeline_mode = #tpu.pipeline_mode<synchronous>, transform_indices = @transform_2, window_bounds = array<i64: 32, 1>}, {transform_indices = @transform_3, window_bounds = array<i64: 1, 32, 2>}]} {
    %c0_i32 = arith.constant 0 : i32
    %0 = arith.cmpi eq, %arg1, %c0_i32 : i32
    %1 = arith.extui %0 : i1 to i32
    %c0_i32_0 = arith.constant 0 : i32
    %2 = arith.cmpi ne, %1, %c0_i32_0 : i32
    scf.if %2 {
      %cst_70 = arith.constant 0.000000e+00 : f32
      %104 = vector.broadcast %cst_70 : f32 to vector<32x256xf32>
      %c0_71 = arith.constant 0 : index
      %c0_72 = arith.constant 0 : index
      %105 = vector.load %arg6[%c0_71, %c0_72] : memref<32x256xf32, #tpu.memory_space<vmem>>, vector<32x256xf32>
      tpu.vector_store %arg6[%c0_71, %c0_72], %104 {strides = array<i32>} : memref<32x256xf32, #tpu.memory_space<vmem>>, vector<32x256xf32>,
      %cst_73 = arith.constant 0.000000e+00 : f32
      %106 = vector.broadcast %cst_73 : f32 to vector<32x256xf32>
      %c0_74 = arith.constant 0 : index
      %c0_75 = arith.constant 0 : index
      %107 = vector.load %arg7[%c0_74, %c0_75] : memref<32x256xf32, #tpu.memory_space<vmem>>, vector<32x256xf32>
      tpu.vector_store %arg7[%c0_74, %c0_75], %106 {strides = array<i32>} : memref<32x256xf32, #tpu.memory_space<vmem>>, vector<32x256xf32>,
    } else {
    }
    %3 = tpu.iota {dimensions = array<i32: 1>} : vector<1x256xi32>
    %c16_i32 = arith.constant 16 : i32
    %c0_i32_1 = arith.constant 0 : i32
    %4 = arith.cmpi eq, %c16_i32, %c0_i32_1 : i32
    %c1_i32 = arith.constant 1 : i32
    %5 = arith.select %4, %c1_i32, %c16_i32 : i32
    %6 = vector.broadcast %5 : i32 to vector<1x256xi32>
    %7 = arith.remsi %3, %6 : vector<1x256xi32>
    %c0_i32_2 = arith.constant 0 : i32
    %8 = vector.broadcast %c0_i32_2 : i32 to vector<1x256xi32>
    %9 = arith.cmpi ne, %7, %8 : vector<1x256xi32>
    %c0_i32_3 = arith.constant 0 : i32
    %10 = vector.broadcast %c0_i32_3 : i32 to vector<1x256xi32>
    %11 = arith.cmpi slt, %7, %10 : vector<1x256xi32>
    %c0_i32_4 = arith.constant 0 : i32
    %12 = arith.cmpi slt, %5, %c0_i32_4 : i32
    %13 = vector.broadcast %12 : i1 to vector<1x256xi1>
    %14 = vector.broadcast %13 : vector<1x256xi1> to vector<1x256xi1>
    %15 = arith.xori %11, %14 : vector<1x256xi1>
    %16 = arith.andi %15, %9 : vector<1x256xi1>
    %17 = vector.broadcast %5 : i32 to vector<1x256xi32>
    %18 = arith.addi %7, %17 : vector<1x256xi32>
    %19 = arith.select %16, %18, %7 : vector<1x256xi1>, vector<1x256xi32>
    %cst = arith.constant 0.000000e+00 : f32
    %20 = vector.broadcast %cst : f32 to vector<32x256xf32>
    %c0 = arith.constant 0 : index
    %c0_5 = arith.constant 0 : index
    %c1 = arith.constant 1 : index
    %21 = vector.load %arg2[%c0, %c0_5, %c1] : memref<1x4x290xbf16, #tpu.memory_space<vmem>>, vector<1x4x256xbf16>
    %22 = vector.shape_cast %21 : vector<1x4x256xbf16> to vector<4x256xbf16>
    %c1_6 = arith.constant 1 : index
    %c0_7 = arith.constant 0 : index
    %c0_8 = arith.constant 0 : index
    %23 = vector.load %arg3[%c1_6, %c0_7, %c0_8] : memref<9x32x4xbf16, #tpu.memory_space<vmem>>, vector<1x32x4xbf16>
    %24 = vector.shape_cast %23 : vector<1x32x4xbf16> to vector<32x4xbf16>
    %cst_9 = arith.constant dense<0.000000e+00> : vector<32x256xf32>
    %25 = tpu.matmul %24, %22, %cst_9 {dimension_numbers = #tpu.dot_dimension_numbers<[1], [0], [0], [1], [0, 0, 1, 1], [], []>} : vector<32x4xbf16>, vector<4x256xbf16>, vector<32x256xf32> -> vector<32x256xf32>
    %26 = arith.addf %20, %25 : vector<32x256xf32>
    %c0_10 = arith.constant 0 : index
    %c0_11 = arith.constant 0 : index
    %c17 = arith.constant 17 : index
    %27 = vector.load %arg2[%c0_10, %c0_11, %c17] : memref<1x4x290xbf16, #tpu.memory_space<vmem>>, vector<1x4x256xbf16>
    %28 = vector.shape_cast %27 : vector<1x4x256xbf16> to vector<4x256xbf16>
    %c4 = arith.constant 4 : index
    %c0_12 = arith.constant 0 : index
    %c0_13 = arith.constant 0 : index
    %29 = vector.load %arg3[%c4, %c0_12, %c0_13] : memref<9x32x4xbf16, #tpu.memory_space<vmem>>, vector<1x32x4xbf16>
    %30 = vector.shape_cast %29 : vector<1x32x4xbf16> to vector<32x4xbf16>
    %cst_14 = arith.constant dense<0.000000e+00> : vector<32x256xf32>
    %31 = tpu.matmul %30, %28, %cst_14 {dimension_numbers = #tpu.dot_dimension_numbers<[1], [0], [0], [1], [0, 0, 1, 1], [], []>} : vector<32x4xbf16>, vector<4x256xbf16>, vector<32x256xf32> -> vector<32x256xf32>
    %32 = arith.addf %26, %31 : vector<32x256xf32>
    %c0_15 = arith.constant 0 : index
    %c0_16 = arith.constant 0 : index
    %c33 = arith.constant 33 : index
    %33 = vector.load %arg2[%c0_15, %c0_16, %c33] : memref<1x4x290xbf16, #tpu.memory_space<vmem>>, vector<1x4x256xbf16>
    %34 = vector.shape_cast %33 : vector<1x4x256xbf16> to vector<4x256xbf16>
    %c7 = arith.constant 7 : index
    %c0_17 = arith.constant 0 : index
    %c0_18 = arith.constant 0 : index
    %35 = vector.load %arg3[%c7, %c0_17, %c0_18] : memref<9x32x4xbf16, #tpu.memory_space<vmem>>, vector<1x32x4xbf16>
    %36 = vector.shape_cast %35 : vector<1x32x4xbf16> to vector<32x4xbf16>
    %cst_19 = arith.constant dense<0.000000e+00> : vector<32x256xf32>
    %37 = tpu.matmul %36, %34, %cst_19 {dimension_numbers = #tpu.dot_dimension_numbers<[1], [0], [0], [1], [0, 0, 1, 1], [], []>} : vector<32x4xbf16>, vector<4x256xbf16>, vector<32x256xf32> -> vector<32x256xf32>
    %38 = arith.addf %32, %37 : vector<32x256xf32>
    %c0_i32_20 = arith.constant 0 : i32
    %39 = vector.broadcast %c0_i32_20 : i32 to vector<1x256xi32>
    %40 = arith.cmpi ne, %19, %39 : vector<1x256xi32>
    %cst_21 = arith.constant 0.000000e+00 : f32
    %41 = vector.broadcast %cst_21 : f32 to vector<32x256xf32>
    %c0_22 = arith.constant 0 : index
    %c0_23 = arith.constant 0 : index
    %c0_24 = arith.constant 0 : index
    %42 = vector.load %arg2[%c0_22, %c0_23, %c0_24] : memref<1x4x290xbf16, #tpu.memory_space<vmem>>, vector<1x4x256xbf16>
    %43 = vector.shape_cast %42 : vector<1x4x256xbf16> to vector<4x256xbf16>
    %c0_25 = arith.constant 0 : index
    %c0_26 = arith.constant 0 : index
    %c0_27 = arith.constant 0 : index
    %44 = vector.load %arg3[%c0_25, %c0_26, %c0_27] : memref<9x32x4xbf16, #tpu.memory_space<vmem>>, vector<1x32x4xbf16>
    %45 = vector.shape_cast %44 : vector<1x32x4xbf16> to vector<32x4xbf16>
    %cst_28 = arith.constant dense<0.000000e+00> : vector<32x256xf32>
    %46 = tpu.matmul %45, %43, %cst_28 {dimension_numbers = #tpu.dot_dimension_numbers<[1], [0], [0], [1], [0, 0, 1, 1], [], []>} : vector<32x4xbf16>, vector<4x256xbf16>, vector<32x256xf32> -> vector<32x256xf32>
    %47 = arith.addf %41, %46 : vector<32x256xf32>
    %c0_29 = arith.constant 0 : index
    %c0_30 = arith.constant 0 : index
    %c16 = arith.constant 16 : index
    %48 = vector.load %arg2[%c0_29, %c0_30, %c16] : memref<1x4x290xbf16, #tpu.memory_space<vmem>>, vector<1x4x256xbf16>
    %49 = vector.shape_cast %48 : vector<1x4x256xbf16> to vector<4x256xbf16>
    %c3 = arith.constant 3 : index
    %c0_31 = arith.constant 0 : index
    %c0_32 = arith.constant 0 : index
    %50 = vector.load %arg3[%c3, %c0_31, %c0_32] : memref<9x32x4xbf16, #tpu.memory_space<vmem>>, vector<1x32x4xbf16>
    %51 = vector.shape_cast %50 : vector<1x32x4xbf16> to vector<32x4xbf16>
    %cst_33 = arith.constant dense<0.000000e+00> : vector<32x256xf32>
    %52 = tpu.matmul %51, %49, %cst_33 {dimension_numbers = #tpu.dot_dimension_numbers<[1], [0], [0], [1], [0, 0, 1, 1], [], []>} : vector<32x4xbf16>, vector<4x256xbf16>, vector<32x256xf32> -> vector<32x256xf32>
    %53 = arith.addf %47, %52 : vector<32x256xf32>
    %c0_34 = arith.constant 0 : index
    %c0_35 = arith.constant 0 : index
    %c32 = arith.constant 32 : index
    %54 = vector.load %arg2[%c0_34, %c0_35, %c32] : memref<1x4x290xbf16, #tpu.memory_space<vmem>>, vector<1x4x256xbf16>
    %55 = vector.shape_cast %54 : vector<1x4x256xbf16> to vector<4x256xbf16>
    %c6 = arith.constant 6 : index
    %c0_36 = arith.constant 0 : index
    %c0_37 = arith.constant 0 : index
    %56 = vector.load %arg3[%c6, %c0_36, %c0_37] : memref<9x32x4xbf16, #tpu.memory_space<vmem>>, vector<1x32x4xbf16>
    %57 = vector.shape_cast %56 : vector<1x32x4xbf16> to vector<32x4xbf16>
    %cst_38 = arith.constant dense<0.000000e+00> : vector<32x256xf32>
    %58 = tpu.matmul %57, %55, %cst_38 {dimension_numbers = #tpu.dot_dimension_numbers<[1], [0], [0], [1], [0, 0, 1, 1], [], []>} : vector<32x4xbf16>, vector<4x256xbf16>, vector<32x256xf32> -> vector<32x256xf32>
    %59 = arith.addf %53, %58 : vector<32x256xf32>
    %cst_39 = arith.constant 0.000000e+00 : f32
    %60 = vector.shape_cast %40 : vector<1x256xi1> to vector<1x256xi1>
    %61 = vector.broadcast %60 : vector<1x256xi1> to vector<32x256xi1>
    %62 = vector.broadcast %cst_39 : f32 to vector<32x256xf32>
    %63 = arith.select %61, %59, %62 : vector<32x256xi1>, vector<32x256xf32>
    %64 = arith.addf %38, %63 : vector<32x256xf32>
    %c15_i32 = arith.constant 15 : i32
    %65 = vector.broadcast %c15_i32 : i32 to vector<1x256xi32>
    %66 = arith.cmpi ne, %19, %65 : vector<1x256xi32>
    %cst_40 = arith.constant 0.000000e+00 : f32
    %67 = vector.broadcast %cst_40 : f32 to vector<32x256xf32>
    %c0_41 = arith.constant 0 : index
    %c0_42 = arith.constant 0 : index
    %c2 = arith.constant 2 : index
    %68 = vector.load %arg2[%c0_41, %c0_42, %c2] : memref<1x4x290xbf16, #tpu.memory_space<vmem>>, vector<1x4x256xbf16>
    %69 = vector.shape_cast %68 : vector<1x4x256xbf16> to vector<4x256xbf16>
    %c2_43 = arith.constant 2 : index
    %c0_44 = arith.constant 0 : index
    %c0_45 = arith.constant 0 : index
    %70 = vector.load %arg3[%c2_43, %c0_44, %c0_45] : memref<9x32x4xbf16, #tpu.memory_space<vmem>>, vector<1x32x4xbf16>
    %71 = vector.shape_cast %70 : vector<1x32x4xbf16> to vector<32x4xbf16>
    %cst_46 = arith.constant dense<0.000000e+00> : vector<32x256xf32>
    %72 = tpu.matmul %71, %69, %cst_46 {dimension_numbers = #tpu.dot_dimension_numbers<[1], [0], [0], [1], [0, 0, 1, 1], [], []>} : vector<32x4xbf16>, vector<4x256xbf16>, vector<32x256xf32> -> vector<32x256xf32>
    %73 = arith.addf %67, %72 : vector<32x256xf32>
    %c0_47 = arith.constant 0 : index
    %c0_48 = arith.constant 0 : index
    %c18 = arith.constant 18 : index
    %74 = vector.load %arg2[%c0_47, %c0_48, %c18] : memref<1x4x290xbf16, #tpu.memory_space<vmem>>, vector<1x4x256xbf16>
    %75 = vector.shape_cast %74 : vector<1x4x256xbf16> to vector<4x256xbf16>
    %c5 = arith.constant 5 : index
    %c0_49 = arith.constant 0 : index
    %c0_50 = arith.constant 0 : index
    %76 = vector.load %arg3[%c5, %c0_49, %c0_50] : memref<9x32x4xbf16, #tpu.memory_space<vmem>>, vector<1x32x4xbf16>
    %77 = vector.shape_cast %76 : vector<1x32x4xbf16> to vector<32x4xbf16>
    %cst_51 = arith.constant dense<0.000000e+00> : vector<32x256xf32>
    %78 = tpu.matmul %77, %75, %cst_51 {dimension_numbers = #tpu.dot_dimension_numbers<[1], [0], [0], [1], [0, 0, 1, 1], [], []>} : vector<32x4xbf16>, vector<4x256xbf16>, vector<32x256xf32> -> vector<32x256xf32>
    %79 = arith.addf %73, %78 : vector<32x256xf32>
    %c0_52 = arith.constant 0 : index
    %c0_53 = arith.constant 0 : index
    %c34 = arith.constant 34 : index
    %80 = vector.load %arg2[%c0_52, %c0_53, %c34] : memref<1x4x290xbf16, #tpu.memory_space<vmem>>, vector<1x4x256xbf16>
    %81 = vector.shape_cast %80 : vector<1x4x256xbf16> to vector<4x256xbf16>
    %c8 = arith.constant 8 : index
    %c0_54 = arith.constant 0 : index
    %c0_55 = arith.constant 0 : index
    %82 = vector.load %arg3[%c8, %c0_54, %c0_55] : memref<9x32x4xbf16, #tpu.memory_space<vmem>>, vector<1x32x4xbf16>
    %83 = vector.shape_cast %82 : vector<1x32x4xbf16> to vector<32x4xbf16>
    %cst_56 = arith.constant dense<0.000000e+00> : vector<32x256xf32>
    %84 = tpu.matmul %83, %81, %cst_56 {dimension_numbers = #tpu.dot_dimension_numbers<[1], [0], [0], [1], [0, 0, 1, 1], [], []>} : vector<32x4xbf16>, vector<4x256xbf16>, vector<32x256xf32> -> vector<32x256xf32>
    %85 = arith.addf %79, %84 : vector<32x256xf32>
    %cst_57 = arith.constant 0.000000e+00 : f32
    %86 = vector.shape_cast %66 : vector<1x256xi1> to vector<1x256xi1>
    %87 = vector.broadcast %86 : vector<1x256xi1> to vector<32x256xi1>
    %88 = vector.broadcast %cst_57 : f32 to vector<32x256xf32>
    %89 = arith.select %87, %85, %88 : vector<32x256xi1>, vector<32x256xf32>
    %90 = arith.addf %64, %89 : vector<32x256xf32>
    %c0_58 = arith.constant 0 : index
    %c0_59 = arith.constant 0 : index
    %91 = vector.load %arg4[%c0_58, %c0_59] : memref<32x1xf32, #tpu.memory_space<vmem>>, vector<32x1xf32>
    %92 = vector.broadcast %91 : vector<32x1xf32> to vector<32x256xf32>
    %93 = arith.addf %90, %92 : vector<32x256xf32>
    %c0_60 = arith.constant 0 : index
    %c0_61 = arith.constant 0 : index
    %94 = vector.load %arg6[%c0_60, %c0_61] : memref<32x256xf32, #tpu.memory_space<vmem>>, vector<32x256xf32>
    %95 = arith.addf %94, %93 : vector<32x256xf32>
    %c0_62 = arith.constant 0 : index
    %c0_63 = arith.constant 0 : index
    %96 = vector.load %arg6[%c0_62, %c0_63] : memref<32x256xf32, #tpu.memory_space<vmem>>, vector<32x256xf32>
    tpu.vector_store %arg6[%c0_62, %c0_63], %95 {strides = array<i32>} : memref<32x256xf32, #tpu.memory_space<vmem>>, vector<32x256xf32>,
    %c0_64 = arith.constant 0 : index
    %c0_65 = arith.constant 0 : index
    %97 = vector.load %arg7[%c0_64, %c0_65] : memref<32x256xf32, #tpu.memory_space<vmem>>, vector<32x256xf32>
    %98 = arith.mulf %93, %93 : vector<32x256xf32>
    %99 = arith.addf %97, %98 : vector<32x256xf32>
    %c0_66 = arith.constant 0 : index
    %c0_67 = arith.constant 0 : index
    %100 = vector.load %arg7[%c0_66, %c0_67] : memref<32x256xf32, #tpu.memory_space<vmem>>, vector<32x256xf32>
    tpu.vector_store %arg7[%c0_66, %c0_67], %99 {strides = array<i32>} : memref<32x256xf32, #tpu.memory_space<vmem>>, vector<32x256xf32>,
    %c0_i32_68 = arith.constant 0 : i32
    %101 = arith.cmpi eq, %arg1, %c0_i32_68 : i32
    %102 = arith.extui %101 : i1 to i32
    %c0_i32_69 = arith.constant 0 : i32
    %103 = arith.cmpi ne, %102, %c0_i32_69 : i32
    scf.if %103 {
      %c0_70 = arith.constant 0 : index
      %c0_71 = arith.constant 0 : index
      %104 = vector.load %arg6[%c0_70, %c0_71] : memref<32x256xf32, #tpu.memory_space<vmem>>, vector<32x256xf32>
      %cst_72 = arith.constant dense<0.000000e+00> : vector<32xf32>
      %105 = vector.multi_reduction <add>, %104, %cst_72 [1] : vector<32x256xf32> to vector<32xf32>
      %106 = vector.shape_cast %105 : vector<32xf32> to vector<32x1xf32>
      %c0_73 = arith.constant 0 : index
      %c0_74 = arith.constant 0 : index
      %c0_75 = arith.constant 0 : index
      %107 = vector.load %arg5[%c0_73, %c0_74, %c0_75] : memref<1x32x2xf32, #tpu.memory_space<vmem>>, vector<1x32x1xf32>
      %108 = vector.shape_cast %107 : vector<1x32x1xf32> to vector<32x1xf32>
      %109 = vector.shape_cast %106 : vector<32x1xf32> to vector<1x32x1xf32>
      tpu.vector_store %arg5[%c0_73, %c0_74, %c0_75], %109 {strides = array<i32>} : memref<1x32x2xf32, #tpu.memory_space<vmem>>, vector<1x32x1xf32>,
      %c0_76 = arith.constant 0 : index
      %c0_77 = arith.constant 0 : index
      %110 = vector.load %arg7[%c0_76, %c0_77] : memref<32x256xf32, #tpu.memory_space<vmem>>, vector<32x256xf32>
      %cst_78 = arith.constant dense<0.000000e+00> : vector<32xf32>
      %111 = vector.multi_reduction <add>, %110, %cst_78 [1] : vector<32x256xf32> to vector<32xf32>
      %112 = vector.shape_cast %111 : vector<32xf32> to vector<32x1xf32>
      %c0_79 = arith.constant 0 : index
      %c0_80 = arith.constant 0 : index
      %c1_81 = arith.constant 1 : index
      %113 = vector.load %arg5[%c0_79, %c0_80, %c1_81] : memref<1x32x2xf32, #tpu.memory_space<vmem>>, vector<1x32x1xf32>
      %114 = vector.shape_cast %113 : vector<1x32x1xf32> to vector<32x1xf32>
      %115 = vector.shape_cast %112 : vector<32x1xf32> to vector<1x32x1xf32>
      tpu.vector_store %arg5[%c0_79, %c0_80, %c1_81], %115 {strides = array<i32>} : memref<1x32x2xf32, #tpu.memory_space<vmem>>, vector<1x32x1xf32>,
    } else {
    }
    return
  }
  func.func @transform_0(%arg0: i32, %arg1: i32) -> (i32, i32, i32) {
    %c0_i32 = arith.constant 0 : i32
    %c0_i32_0 = arith.constant 0 : i32
    %c0_i32_1 = arith.constant 0 : i32
    return %arg0, %c0_i32, %c0_i32_0 : i32, i32, i32
  }
  func.func @transform_1(%arg0: i32, %arg1: i32) -> (i32, i32, i32) {
    %c0_i32 = arith.constant 0 : i32
    %c0_i32_0 = arith.constant 0 : i32
    %c0_i32_1 = arith.constant 0 : i32
    %c0_i32_2 = arith.constant 0 : i32
    return %c0_i32, %c0_i32_0, %c0_i32_1 : i32, i32, i32
  }
  func.func @transform_2(%arg0: i32, %arg1: i32) -> (i32, i32) {
    %c0_i32 = arith.constant 0 : i32
    %c0_i32_0 = arith.constant 0 : i32
    %c0_i32_1 = arith.constant 0 : i32
    return %c0_i32, %c0_i32_0 : i32, i32
  }
  func.func @transform_3(%arg0: i32, %arg1: i32) -> (i32, i32, i32) {
    %c0_i32 = arith.constant 0 : i32
    %c0_i32_0 = arith.constant 0 : i32
    %c0_i32_1 = arith.constant 0 : i32
    return %arg0, %c0_i32, %c0_i32_0 : i32, i32, i32
  }
}

module attributes {stable_mosaic.version = 11 : i64} {
  func.func @kernel(%arg0: i32, %arg1: i32, %arg2: memref<1x4x290xbf16, #tpu.memory_space<vmem>>, %arg3: memref<9x32x4xbf16, #tpu.memory_space<vmem>>, %arg4: memref<1x32x1xf32, #tpu.memory_space<vmem>>, %arg5: memref<1x32x1xf32, #tpu.memory_space<vmem>>, %arg6: memref<1x32x256xf32, #tpu.memory_space<vmem>>) attributes {dimension_semantics = [#tpu.dimension_semantics<parallel>, #tpu.dimension_semantics<arbitrary>], iteration_bounds = array<i64: 2, 1>, scalar_prefetch = 0 : i64, scratch_operands = 0 : i64, tpu.core_type = #tpu.core_type<tc>, window_params = [{transform_indices = @transform_0, window_bounds = array<i64: 1, 4, 290>}, {pipeline_mode = #tpu.pipeline_mode<synchronous>, transform_indices = @transform_1, window_bounds = array<i64: 9, 32, 4>}, {transform_indices = @transform_2, window_bounds = array<i64: 1, 32, 1>}, {transform_indices = @transform_3, window_bounds = array<i64: 1, 32, 1>}, {transform_indices = @transform_4, window_bounds = array<i64: 1, 32, 256>}]} {
    %0 = tpu.iota {dimensions = array<i32: 1>} : vector<1x256xi32>
    %c16_i32 = arith.constant 16 : i32
    %c0_i32 = arith.constant 0 : i32
    %1 = arith.cmpi eq, %c16_i32, %c0_i32 : i32
    %c1_i32 = arith.constant 1 : i32
    %2 = arith.select %1, %c1_i32, %c16_i32 : i32
    %3 = vector.broadcast %2 : i32 to vector<1x256xi32>
    %4 = arith.remsi %0, %3 : vector<1x256xi32>
    %c0_i32_0 = arith.constant 0 : i32
    %5 = vector.broadcast %c0_i32_0 : i32 to vector<1x256xi32>
    %6 = arith.cmpi ne, %4, %5 : vector<1x256xi32>
    %c0_i32_1 = arith.constant 0 : i32
    %7 = vector.broadcast %c0_i32_1 : i32 to vector<1x256xi32>
    %8 = arith.cmpi slt, %4, %7 : vector<1x256xi32>
    %c0_i32_2 = arith.constant 0 : i32
    %9 = arith.cmpi slt, %2, %c0_i32_2 : i32
    %10 = vector.broadcast %9 : i1 to vector<1x256xi1>
    %11 = vector.broadcast %10 : vector<1x256xi1> to vector<1x256xi1>
    %12 = arith.xori %8, %11 : vector<1x256xi1>
    %13 = arith.andi %12, %6 : vector<1x256xi1>
    %14 = vector.broadcast %2 : i32 to vector<1x256xi32>
    %15 = arith.addi %4, %14 : vector<1x256xi32>
    %16 = arith.select %13, %15, %4 : vector<1x256xi1>, vector<1x256xi32>
    %cst = arith.constant 0.000000e+00 : f32
    %17 = vector.broadcast %cst : f32 to vector<32x256xf32>
    %c0 = arith.constant 0 : index
    %c0_3 = arith.constant 0 : index
    %c1 = arith.constant 1 : index
    %18 = vector.load %arg2[%c0, %c0_3, %c1] : memref<1x4x290xbf16, #tpu.memory_space<vmem>>, vector<1x4x256xbf16>
    %19 = vector.shape_cast %18 : vector<1x4x256xbf16> to vector<4x256xbf16>
    %c1_4 = arith.constant 1 : index
    %c0_5 = arith.constant 0 : index
    %c0_6 = arith.constant 0 : index
    %20 = vector.load %arg3[%c1_4, %c0_5, %c0_6] : memref<9x32x4xbf16, #tpu.memory_space<vmem>>, vector<1x32x4xbf16>
    %21 = vector.shape_cast %20 : vector<1x32x4xbf16> to vector<32x4xbf16>
    %cst_7 = arith.constant dense<0.000000e+00> : vector<32x256xf32>
    %22 = tpu.matmul %21, %19, %cst_7 {dimension_numbers = #tpu.dot_dimension_numbers<[1], [0], [0], [1], [0, 0, 1, 1], [], []>} : vector<32x4xbf16>, vector<4x256xbf16>, vector<32x256xf32> -> vector<32x256xf32>
    %23 = arith.addf %17, %22 : vector<32x256xf32>
    %c0_8 = arith.constant 0 : index
    %c0_9 = arith.constant 0 : index
    %c17 = arith.constant 17 : index
    %24 = vector.load %arg2[%c0_8, %c0_9, %c17] : memref<1x4x290xbf16, #tpu.memory_space<vmem>>, vector<1x4x256xbf16>
    %25 = vector.shape_cast %24 : vector<1x4x256xbf16> to vector<4x256xbf16>
    %c4 = arith.constant 4 : index
    %c0_10 = arith.constant 0 : index
    %c0_11 = arith.constant 0 : index
    %26 = vector.load %arg3[%c4, %c0_10, %c0_11] : memref<9x32x4xbf16, #tpu.memory_space<vmem>>, vector<1x32x4xbf16>
    %27 = vector.shape_cast %26 : vector<1x32x4xbf16> to vector<32x4xbf16>
    %cst_12 = arith.constant dense<0.000000e+00> : vector<32x256xf32>
    %28 = tpu.matmul %27, %25, %cst_12 {dimension_numbers = #tpu.dot_dimension_numbers<[1], [0], [0], [1], [0, 0, 1, 1], [], []>} : vector<32x4xbf16>, vector<4x256xbf16>, vector<32x256xf32> -> vector<32x256xf32>
    %29 = arith.addf %23, %28 : vector<32x256xf32>
    %c0_13 = arith.constant 0 : index
    %c0_14 = arith.constant 0 : index
    %c33 = arith.constant 33 : index
    %30 = vector.load %arg2[%c0_13, %c0_14, %c33] : memref<1x4x290xbf16, #tpu.memory_space<vmem>>, vector<1x4x256xbf16>
    %31 = vector.shape_cast %30 : vector<1x4x256xbf16> to vector<4x256xbf16>
    %c7 = arith.constant 7 : index
    %c0_15 = arith.constant 0 : index
    %c0_16 = arith.constant 0 : index
    %32 = vector.load %arg3[%c7, %c0_15, %c0_16] : memref<9x32x4xbf16, #tpu.memory_space<vmem>>, vector<1x32x4xbf16>
    %33 = vector.shape_cast %32 : vector<1x32x4xbf16> to vector<32x4xbf16>
    %cst_17 = arith.constant dense<0.000000e+00> : vector<32x256xf32>
    %34 = tpu.matmul %33, %31, %cst_17 {dimension_numbers = #tpu.dot_dimension_numbers<[1], [0], [0], [1], [0, 0, 1, 1], [], []>} : vector<32x4xbf16>, vector<4x256xbf16>, vector<32x256xf32> -> vector<32x256xf32>
    %35 = arith.addf %29, %34 : vector<32x256xf32>
    %c0_i32_18 = arith.constant 0 : i32
    %36 = vector.broadcast %c0_i32_18 : i32 to vector<1x256xi32>
    %37 = arith.cmpi ne, %16, %36 : vector<1x256xi32>
    %cst_19 = arith.constant 0.000000e+00 : f32
    %38 = vector.broadcast %cst_19 : f32 to vector<32x256xf32>
    %c0_20 = arith.constant 0 : index
    %c0_21 = arith.constant 0 : index
    %c0_22 = arith.constant 0 : index
    %39 = vector.load %arg2[%c0_20, %c0_21, %c0_22] : memref<1x4x290xbf16, #tpu.memory_space<vmem>>, vector<1x4x256xbf16>
    %40 = vector.shape_cast %39 : vector<1x4x256xbf16> to vector<4x256xbf16>
    %c0_23 = arith.constant 0 : index
    %c0_24 = arith.constant 0 : index
    %c0_25 = arith.constant 0 : index
    %41 = vector.load %arg3[%c0_23, %c0_24, %c0_25] : memref<9x32x4xbf16, #tpu.memory_space<vmem>>, vector<1x32x4xbf16>
    %42 = vector.shape_cast %41 : vector<1x32x4xbf16> to vector<32x4xbf16>
    %cst_26 = arith.constant dense<0.000000e+00> : vector<32x256xf32>
    %43 = tpu.matmul %42, %40, %cst_26 {dimension_numbers = #tpu.dot_dimension_numbers<[1], [0], [0], [1], [0, 0, 1, 1], [], []>} : vector<32x4xbf16>, vector<4x256xbf16>, vector<32x256xf32> -> vector<32x256xf32>
    %44 = arith.addf %38, %43 : vector<32x256xf32>
    %c0_27 = arith.constant 0 : index
    %c0_28 = arith.constant 0 : index
    %c16 = arith.constant 16 : index
    %45 = vector.load %arg2[%c0_27, %c0_28, %c16] : memref<1x4x290xbf16, #tpu.memory_space<vmem>>, vector<1x4x256xbf16>
    %46 = vector.shape_cast %45 : vector<1x4x256xbf16> to vector<4x256xbf16>
    %c3 = arith.constant 3 : index
    %c0_29 = arith.constant 0 : index
    %c0_30 = arith.constant 0 : index
    %47 = vector.load %arg3[%c3, %c0_29, %c0_30] : memref<9x32x4xbf16, #tpu.memory_space<vmem>>, vector<1x32x4xbf16>
    %48 = vector.shape_cast %47 : vector<1x32x4xbf16> to vector<32x4xbf16>
    %cst_31 = arith.constant dense<0.000000e+00> : vector<32x256xf32>
    %49 = tpu.matmul %48, %46, %cst_31 {dimension_numbers = #tpu.dot_dimension_numbers<[1], [0], [0], [1], [0, 0, 1, 1], [], []>} : vector<32x4xbf16>, vector<4x256xbf16>, vector<32x256xf32> -> vector<32x256xf32>
    %50 = arith.addf %44, %49 : vector<32x256xf32>
    %c0_32 = arith.constant 0 : index
    %c0_33 = arith.constant 0 : index
    %c32 = arith.constant 32 : index
    %51 = vector.load %arg2[%c0_32, %c0_33, %c32] : memref<1x4x290xbf16, #tpu.memory_space<vmem>>, vector<1x4x256xbf16>
    %52 = vector.shape_cast %51 : vector<1x4x256xbf16> to vector<4x256xbf16>
    %c6 = arith.constant 6 : index
    %c0_34 = arith.constant 0 : index
    %c0_35 = arith.constant 0 : index
    %53 = vector.load %arg3[%c6, %c0_34, %c0_35] : memref<9x32x4xbf16, #tpu.memory_space<vmem>>, vector<1x32x4xbf16>
    %54 = vector.shape_cast %53 : vector<1x32x4xbf16> to vector<32x4xbf16>
    %cst_36 = arith.constant dense<0.000000e+00> : vector<32x256xf32>
    %55 = tpu.matmul %54, %52, %cst_36 {dimension_numbers = #tpu.dot_dimension_numbers<[1], [0], [0], [1], [0, 0, 1, 1], [], []>} : vector<32x4xbf16>, vector<4x256xbf16>, vector<32x256xf32> -> vector<32x256xf32>
    %56 = arith.addf %50, %55 : vector<32x256xf32>
    %cst_37 = arith.constant 0.000000e+00 : f32
    %57 = vector.shape_cast %37 : vector<1x256xi1> to vector<1x256xi1>
    %58 = vector.broadcast %57 : vector<1x256xi1> to vector<32x256xi1>
    %59 = vector.broadcast %cst_37 : f32 to vector<32x256xf32>
    %60 = arith.select %58, %56, %59 : vector<32x256xi1>, vector<32x256xf32>
    %61 = arith.addf %35, %60 : vector<32x256xf32>
    %c15_i32 = arith.constant 15 : i32
    %62 = vector.broadcast %c15_i32 : i32 to vector<1x256xi32>
    %63 = arith.cmpi ne, %16, %62 : vector<1x256xi32>
    %cst_38 = arith.constant 0.000000e+00 : f32
    %64 = vector.broadcast %cst_38 : f32 to vector<32x256xf32>
    %c0_39 = arith.constant 0 : index
    %c0_40 = arith.constant 0 : index
    %c2 = arith.constant 2 : index
    %65 = vector.load %arg2[%c0_39, %c0_40, %c2] : memref<1x4x290xbf16, #tpu.memory_space<vmem>>, vector<1x4x256xbf16>
    %66 = vector.shape_cast %65 : vector<1x4x256xbf16> to vector<4x256xbf16>
    %c2_41 = arith.constant 2 : index
    %c0_42 = arith.constant 0 : index
    %c0_43 = arith.constant 0 : index
    %67 = vector.load %arg3[%c2_41, %c0_42, %c0_43] : memref<9x32x4xbf16, #tpu.memory_space<vmem>>, vector<1x32x4xbf16>
    %68 = vector.shape_cast %67 : vector<1x32x4xbf16> to vector<32x4xbf16>
    %cst_44 = arith.constant dense<0.000000e+00> : vector<32x256xf32>
    %69 = tpu.matmul %68, %66, %cst_44 {dimension_numbers = #tpu.dot_dimension_numbers<[1], [0], [0], [1], [0, 0, 1, 1], [], []>} : vector<32x4xbf16>, vector<4x256xbf16>, vector<32x256xf32> -> vector<32x256xf32>
    %70 = arith.addf %64, %69 : vector<32x256xf32>
    %c0_45 = arith.constant 0 : index
    %c0_46 = arith.constant 0 : index
    %c18 = arith.constant 18 : index
    %71 = vector.load %arg2[%c0_45, %c0_46, %c18] : memref<1x4x290xbf16, #tpu.memory_space<vmem>>, vector<1x4x256xbf16>
    %72 = vector.shape_cast %71 : vector<1x4x256xbf16> to vector<4x256xbf16>
    %c5 = arith.constant 5 : index
    %c0_47 = arith.constant 0 : index
    %c0_48 = arith.constant 0 : index
    %73 = vector.load %arg3[%c5, %c0_47, %c0_48] : memref<9x32x4xbf16, #tpu.memory_space<vmem>>, vector<1x32x4xbf16>
    %74 = vector.shape_cast %73 : vector<1x32x4xbf16> to vector<32x4xbf16>
    %cst_49 = arith.constant dense<0.000000e+00> : vector<32x256xf32>
    %75 = tpu.matmul %74, %72, %cst_49 {dimension_numbers = #tpu.dot_dimension_numbers<[1], [0], [0], [1], [0, 0, 1, 1], [], []>} : vector<32x4xbf16>, vector<4x256xbf16>, vector<32x256xf32> -> vector<32x256xf32>
    %76 = arith.addf %70, %75 : vector<32x256xf32>
    %c0_50 = arith.constant 0 : index
    %c0_51 = arith.constant 0 : index
    %c34 = arith.constant 34 : index
    %77 = vector.load %arg2[%c0_50, %c0_51, %c34] : memref<1x4x290xbf16, #tpu.memory_space<vmem>>, vector<1x4x256xbf16>
    %78 = vector.shape_cast %77 : vector<1x4x256xbf16> to vector<4x256xbf16>
    %c8 = arith.constant 8 : index
    %c0_52 = arith.constant 0 : index
    %c0_53 = arith.constant 0 : index
    %79 = vector.load %arg3[%c8, %c0_52, %c0_53] : memref<9x32x4xbf16, #tpu.memory_space<vmem>>, vector<1x32x4xbf16>
    %80 = vector.shape_cast %79 : vector<1x32x4xbf16> to vector<32x4xbf16>
    %cst_54 = arith.constant dense<0.000000e+00> : vector<32x256xf32>
    %81 = tpu.matmul %80, %78, %cst_54 {dimension_numbers = #tpu.dot_dimension_numbers<[1], [0], [0], [1], [0, 0, 1, 1], [], []>} : vector<32x4xbf16>, vector<4x256xbf16>, vector<32x256xf32> -> vector<32x256xf32>
    %82 = arith.addf %76, %81 : vector<32x256xf32>
    %cst_55 = arith.constant 0.000000e+00 : f32
    %83 = vector.shape_cast %63 : vector<1x256xi1> to vector<1x256xi1>
    %84 = vector.broadcast %83 : vector<1x256xi1> to vector<32x256xi1>
    %85 = vector.broadcast %cst_55 : f32 to vector<32x256xf32>
    %86 = arith.select %84, %82, %85 : vector<32x256xi1>, vector<32x256xf32>
    %87 = arith.addf %61, %86 : vector<32x256xf32>
    %c0_56 = arith.constant 0 : index
    %c0_57 = arith.constant 0 : index
    %c0_58 = arith.constant 0 : index
    %88 = vector.load %arg4[%c0_56, %c0_57, %c0_58] : memref<1x32x1xf32, #tpu.memory_space<vmem>>, vector<1x32x1xf32>
    %89 = vector.shape_cast %88 : vector<1x32x1xf32> to vector<32x1xf32>
    %90 = vector.broadcast %89 : vector<32x1xf32> to vector<32x256xf32>
    %91 = arith.mulf %87, %90 : vector<32x256xf32>
    %c0_59 = arith.constant 0 : index
    %c0_60 = arith.constant 0 : index
    %c0_61 = arith.constant 0 : index
    %92 = vector.load %arg5[%c0_59, %c0_60, %c0_61] : memref<1x32x1xf32, #tpu.memory_space<vmem>>, vector<1x32x1xf32>
    %93 = vector.shape_cast %92 : vector<1x32x1xf32> to vector<32x1xf32>
    %94 = vector.broadcast %93 : vector<32x1xf32> to vector<32x256xf32>
    %95 = arith.addf %91, %94 : vector<32x256xf32>
    %cst_62 = arith.constant 0.000000e+00 : f32
    %96 = vector.broadcast %cst_62 : f32 to vector<32x256xf32>
    %97 = arith.subf %96, %95 : vector<32x256xf32>
    %98 = math.exp %97 : vector<32x256xf32>
    %cst_63 = arith.constant 1.000000e+00 : f32
    %99 = vector.broadcast %cst_63 : f32 to vector<32x256xf32>
    %100 = arith.addf %99, %98 : vector<32x256xf32>
    %101 = tpu.reciprocal %100 {approx = true} : vector<32x256xf32> -> vector<32x256xf32>
    %102 = arith.mulf %95, %101 : vector<32x256xf32>
    %c0_64 = arith.constant 0 : index
    %c0_65 = arith.constant 0 : index
    %c0_66 = arith.constant 0 : index
    %103 = vector.load %arg6[%c0_64, %c0_65, %c0_66] : memref<1x32x256xf32, #tpu.memory_space<vmem>>, vector<1x32x256xf32>
    %104 = vector.shape_cast %103 : vector<1x32x256xf32> to vector<32x256xf32>
    %105 = vector.shape_cast %102 : vector<32x256xf32> to vector<1x32x256xf32>
    tpu.vector_store %arg6[%c0_64, %c0_65, %c0_66], %105 {strides = array<i32>} : memref<1x32x256xf32, #tpu.memory_space<vmem>>, vector<1x32x256xf32>,
    return
  }
  func.func @transform_0(%arg0: i32, %arg1: i32) -> (i32, i32, i32) {
    %c0_i32 = arith.constant 0 : i32
    %c0_i32_0 = arith.constant 0 : i32
    %c0_i32_1 = arith.constant 0 : i32
    return %arg0, %c0_i32, %c0_i32_0 : i32, i32, i32
  }
  func.func @transform_1(%arg0: i32, %arg1: i32) -> (i32, i32, i32) {
    %c0_i32 = arith.constant 0 : i32
    %c0_i32_0 = arith.constant 0 : i32
    %c0_i32_1 = arith.constant 0 : i32
    %c0_i32_2 = arith.constant 0 : i32
    return %c0_i32, %c0_i32_0, %c0_i32_1 : i32, i32, i32
  }
  func.func @transform_2(%arg0: i32, %arg1: i32) -> (i32, i32, i32) {
    %c0_i32 = arith.constant 0 : i32
    %c0_i32_0 = arith.constant 0 : i32
    %c0_i32_1 = arith.constant 0 : i32
    return %arg0, %c0_i32, %c0_i32_0 : i32, i32, i32
  }
  func.func @transform_3(%arg0: i32, %arg1: i32) -> (i32, i32, i32) {
    %c0_i32 = arith.constant 0 : i32
    %c0_i32_0 = arith.constant 0 : i32
    %c0_i32_1 = arith.constant 0 : i32
    return %arg0, %c0_i32, %c0_i32_0 : i32, i32, i32
  }
  func.func @transform_4(%arg0: i32, %arg1: i32) -> (i32, i32, i32) {
    %c0_i32 = arith.constant 0 : i32
    %c0_i32_0 = arith.constant 0 : i32
    return %arg0, %c0_i32, %arg1 : i32, i32, i32
  }
}

</mosaic_0001>

<llo_original>
// kernel: squeeze.2
$region0: #{squeeze.2}
  %s0 = inlined_call_operand.vmem [shape: f32[2,32], index: 0, kind: input, shape index: {}]
  %s1 = inlined_call_operand.vmem [shape: f32[2,8,4], index: 1, kind: output, shape index: {}]
  $region1: #{squeeze.2} parent=0
    #allocation0 [shape = 'u8[4096]{0}', space=vmem, size = 0x1000, scoped, tag = 'scoped mem for input reshape']
    %s3 = ssub.s32 4, 1
    %v4 = vld [vmem:[%s0] sm:%s3]
    %5 = vst [vmem:[#allocation0] sm:%s3] %v4
    %v6 = vld [vmem:[#allocation0] sm:$0x3]
    %vm7 = vcmask 31744
    %8 = vst.msk [vmem:[%s1] ss:$8 sm:$0x3] %vm7, %v6
    %v9 = vld [vmem:[#allocation0] sm:$0x3]
    %10 = vrot.lane.b32.xlu0 %v9, 124
    %v11 = vpop.permute.xlu0 %10
    %vm12 = vcmask 31744
    %s13 = scalar_lea.vmem %s1, 1
    %14 = vst.msk [vmem:[%s13] ss:$8 sm:$0x3] %vm12, %v11
    %v15 = vld [vmem:[#allocation0] sm:$0x3]
    %16 = vrot.lane.b32.xlu0 %v15, 120
    %v17 = vpop.permute.xlu0 %16
    %vm18 = vcmask 31744
    %s19 = scalar_lea.vmem %s1, 2
    %20 = vst.msk [vmem:[%s19] ss:$8 sm:$0x3] %vm18, %v17
    %v21 = vld [vmem:[#allocation0] sm:$0x3]
    %22 = vrot.lane.b32.xlu0 %v21, 116
    %v23 = vpop.permute.xlu0 %22
    %vm24 = vcmask 31744
    %s25 = scalar_lea.vmem %s1, 3
    %26 = vst.msk [vmem:[%s25] ss:$8 sm:$0x3] %vm24, %v23
    %v27 = vld [vmem:[#allocation0] sm:$0x3]
    %28 = vrot.lane.b32.xlu0 %v27, 112
    %v29 = vpop.permute.xlu0 %28
    %vm30 = vcmask 31744
    %s31 = scalar_lea.vmem %s1, 4
    %32 = vst.msk [vmem:[%s31] ss:$8 sm:$0x3] %vm30, %v29
    %v33 = vld [vmem:[#allocation0] sm:$0x3]
    %34 = vrot.lane.b32.xlu0 %v33, 108
    %v35 = vpop.permute.xlu0 %34
    %vm36 = vcmask 31744
    %s37 = scalar_lea.vmem %s1, 5
    %38 = vst.msk [vmem:[%s37] ss:$8 sm:$0x3] %vm36, %v35
    %v39 = vld [vmem:[#allocation0] sm:$0x3]
    %40 = vrot.lane.b32.xlu0 %v39, 104
    %v41 = vpop.permute.xlu0 %40
    %vm42 = vcmask 31744
    %s43 = scalar_lea.vmem %s1, 6
    %44 = vst.msk [vmem:[%s43] ss:$8 sm:$0x3] %vm42, %v41
    %v45 = vld [vmem:[#allocation0] sm:$0x3]
    %46 = vrot.lane.b32.xlu0 %v45, 100
    %v47 = vpop.permute.xlu0 %46
    %vm48 = vcmask 31744
    %s49 = scalar_lea.vmem %s1, 7
    %50 = vst.msk [vmem:[%s49] ss:$8 sm:$0x3] %vm48, %v47

// kernel: block_forward.3
$region0: #{block_forward.3}
  #allocation0 [shape = 'u32[]', space=smem, size = 0x4, offset = 0x4, fixed_abs, tag = 'smem constant byte address 0x4 - core index']
  #allocation1 [shape = 'u32[72,128]{1,0:T(1,128)}', space=vmem, size = 0x9000, scoped, tag = 'internal scratch']
  %s0 = inlined_call_operand.vmem [shape: bf16[2,4,290], index: 0, kind: input, shape index: {}]
  %s1 = inlined_call_operand.vmem [shape: bf16[9,32,4], index: 1, kind: input, shape index: {}]
  %s2 = inlined_call_operand.vmem [shape: f32[2,32,1], index: 2, kind: input, shape index: {}]
  %s3 = inlined_call_operand.vmem [shape: f32[2,32,1], index: 3, kind: input, shape index: {}]
  %s4 = inlined_call_operand.vmem [shape: f32[2,32,256], index: 4, kind: output, shape index: {}]
  %s5 = sld [smem:[#allocation0]]
  $region49: #{block_forward.3} parent=0
    _
  %s7 = ssub.s32 1, %s5
  %s8 = scalar_select 0, %s7, %s5
  loop: start=0, step=1, limit=4
  $region2: #{block_forward.3} parent=0 // loop_pre_header
    _
  $region3: #{block_forward.3} parent=0 // loop_header
    %s10 = sphi 0, %s14
    %p11 = scmp.ge.s32.totalorder %s10, 4
    %s17 = sphi 0, %s29
    %s18 = sphi 0, %s25
    %s19 = sphi 0, %s17
    %s20 = sphi 0, %s18
    %s21 = sphi 0, %s19
    %s22 = sphi 0, %s20
    %s32 = sphi 0, %s34
    %s35 = sphi 0, %s32
    %s36 = sphi 0, %s35
    %s52 = sphi 0, %s36
    %s56 = sphi 0, %s56
    %s58 = sphi 0, %s56
    %s59 = sphi 0, %s58
    %s73 = sphi 0, %s59
    %s79 = sphi 0, %s81
    %s82 = sphi 0, %s79
    %s83 = sphi 0, %s82
    %s99 = sphi 0, %s83
    %s105 = sphi 0, %s107
    %s108 = sphi 0, %s105
    %s109 = sphi 0, %s108
    %s125 = sphi 0, %s109
    %s133 = sphi 0, %s135
    %s136 = sphi 0, %s133
    %s137 = sphi 0, %s136
    %s153 = sphi 0, %s137
  $region4: #{block_forward.3} parent=0 // loop_header_branch
    %13 = sbr.rel (%p11) target = $region8
  $region5: #{block_forward.3} parent=0 // loop_body
    %s15 = ssub.s32 %s10, 1
    %s16 = ssub.s32 %s10, 2
    %s23 = sadd.s32 1, %s18
    %p24 = scmp.ge.s32.totalorder %s23, 1
    %s25 = scalar_select %p24, 0, %s23
    %s26 = sadd.s32 1, %s17
    %s27 = scalar_select %p24, %s26, %s17
    %p28 = scmp.ge.s32.totalorder %s27, 2
    %s29 = scalar_select %p28, 0, %s27
    %s30 = ssub.s32 %s17, %s29
    %p31 = scmp.eq.s32.totalorder %s30, 0
    %s33 = sadd.s32 %s32, 1
    %s34 = scalar_select %p31, %s32, %s33
    %p37 = pneg %p31
    %p38 = scmp.eq.s32.totalorder %s10, 1
    %p39 = por %p37, %p38
    %p40 = scmp.ne.s32.totalorder %s32, %s35
    %p41 = scmp.eq.s32.totalorder %s10, 0
    %p42 = por %p40, %p41
    %p43 = scmp.ne.s32.totalorder %s32, %s35
    %p44 = scmp.eq.s32.totalorder %s15, 1
    %p45 = por %p43, %p44
    %p46 = scmp.ne.s32.totalorder %s35, %s36
    %p47 = scmp.eq.s32.totalorder %s15, 0
    %p48 = por %p46, %p47
    %p49 = scmp.ne.s32.totalorder %s35, %s36
    %p50 = scmp.eq.s32.totalorder %s16, 1
    %p51 = por %p49, %p50
    %p53 = scmp.ne.s32.totalorder %s36, %s52
    %p54 = scmp.eq.s32.totalorder %s16, 0
    %p55 = por %p53, %p54
    %s57 = sadd.s32 %s56, 1
    %p60 = scmp.eq.s32.totalorder %s10, 1
    %p61 = scmp.ne.s32.totalorder %s56, %s58
    %p62 = scmp.eq.s32.totalorder %s10, 0
    %p63 = por %p61, %p62
    %p64 = scmp.ne.s32.totalorder %s56, %s58
    %p65 = scmp.eq.s32.totalorder %s15, 1
    %p66 = por %p64, %p65
    %p67 = scmp.ne.s32.totalorder %s58, %s59
    %p68 = scmp.eq.s32.totalorder %s15, 0
    %p69 = por %p67, %p68
    %p70 = scmp.ne.s32.totalorder %s58, %s59
    %p71 = scmp.eq.s32.totalorder %s16, 1
    %p72 = por %p70, %p71
    %p74 = scmp.ne.s32.totalorder %s59, %s73
    %p75 = scmp.eq.s32.totalorder %s16, 0
    %p76 = por %p74, %p75
    %s77 = ssub.s32 %s17, %s29
    %p78 = scmp.eq.s32.totalorder %s77, 0
    %s80 = sadd.s32 %s79, 1
    %s81 = scalar_select %p78, %s79, %s80
    %p84 = pneg %p78
    %p85 = scmp.eq.s32.totalorder %s10, 1
    %p86 = por %p84, %p85
    %p87 = scmp.ne.s32.totalorder %s79, %s82
    %p88 = scmp.eq.s32.totalorder %s10, 0
    %p89 = por %p87, %p88
    %p90 = scmp.ne.s32.totalorder %s79, %s82
    %p91 = scmp.eq.s32.totalorder %s15, 1
    %p92 = por %p90, %p91
    %p93 = scmp.ne.s32.totalorder %s82, %s83
    %p94 = scmp.eq.s32.totalorder %s15, 0
    %p95 = por %p93, %p94
    %p96 = scmp.ne.s32.totalorder %s82, %s83
    %p97 = scmp.eq.s32.totalorder %s16, 1
    %p98 = por %p96, %p97
    %p100 = scmp.ne.s32.totalorder %s83, %s99
    %p101 = scmp.eq.s32.totalorder %s16, 0
    %p102 = por %p100, %p101
    %s103 = ssub.s32 %s17, %s29
    %p104 = scmp.eq.s32.totalorder %s103, 0
    %s106 = sadd.s32 %s105, 1
    %s107 = scalar_select %p104, %s105, %s106
    %p110 = pneg %p104
    %p111 = scmp.eq.s32.totalorder %s10, 1
    %p112 = por %p110, %p111
    %p113 = scmp.ne.s32.totalorder %s105, %s108
    %p114 = scmp.eq.s32.totalorder %s10, 0
    %p115 = por %p113, %p114
    %p116 = scmp.ne.s32.totalorder %s105, %s108
    %p117 = scmp.eq.s32.totalorder %s15, 1
    %p118 = por %p116, %p117
    %p119 = scmp.ne.s32.totalorder %s108, %s109
    %p120 = scmp.eq.s32.totalorder %s15, 0
    %p121 = por %p119, %p120
    %p122 = scmp.ne.s32.totalorder %s108, %s109
    %p123 = scmp.eq.s32.totalorder %s16, 1
    %p124 = por %p122, %p123
    %p126 = scmp.ne.s32.totalorder %s109, %s125
    %p127 = scmp.eq.s32.totalorder %s16, 0
    %p128 = por %p126, %p127
    %s129 = ssub.s32 %s17, %s29
    %s130 = ssub.s32 %s18, %s25
    %s131 = sor.u32 %s129, %s130
    %p132 = scmp.eq.s32.totalorder %s131, 0
    %s134 = sadd.s32 %s133, 1
    %s135 = scalar_select %p132, %s133, %s134
    %p138 = pneg %p132
    %p139 = scmp.eq.s32.totalorder %s10, 1
    %p140 = por %p138, %p139
    %p141 = scmp.ne.s32.totalorder %s133, %s136
    %p142 = scmp.eq.s32.totalorder %s10, 0
    %p143 = por %p141, %p142
    %p144 = scmp.ne.s32.totalorder %s133, %s136
    %p145 = scmp.eq.s32.totalorder %s15, 1
    %p146 = por %p144, %p145
    %p147 = scmp.ne.s32.totalorder %s136, %s137
    %p148 = scmp.eq.s32.totalorder %s15, 0
    %p149 = por %p147, %p148
    %p150 = scmp.ne.s32.totalorder %s136, %s137
    %p151 = scmp.eq.s32.totalorder %s16, 1
    %p152 = por %p150, %p151
    %p154 = scmp.ne.s32.totalorder %s137, %s153
    %p155 = scmp.eq.s32.totalorder %s16, 0
    %p156 = por %p154, %p155
    %p157 = scmp.le.s32.totalorder 1, %s10
    %p158 = scmp.lt.s32.totalorder %s10, 3
    %p159 = pnand %p157, %p158
    %p160 = pneg %p159
    // Predicated region
    $region9: #{block_forward.3} parent=5 // pred_check
      _
    $region10: #{block_forward.3} parent=5 // pred_check_branch
      %162 = sbr.rel (%p159) target = $region12
    $region11: #{block_forward.3} parent=5 // pred_region
      %s163 = ssub.s32 %s10, 1
      // Predicated region
      $region13: #{block_forward.3} parent=11 // pred_check
        %p164 = pneg %p69
      $region14: #{block_forward.3} parent=11 // pred_check_branch
        %166 = sbr.rel (%p164) target = $region16
      $region15: #{block_forward.3} parent=11 // pred_region
        _
      $region16: #{block_forward.3} parent=11 // pred_fallthru
        _
    $region12: #{block_forward.3} parent=5 // pred_fallthru
      _
    %p167 = scmp.lt.s32.totalorder %s10, 2
    // Predicated region
    $region17: #{block_forward.3} parent=5 // pred_check
      %p168 = pneg %p167
    $region18: #{block_forward.3} parent=5 // pred_check_branch
      %170 = sbr.rel (%p168) target = $region20
    $region19: #{block_forward.3} parent=5 // pred_region
      // Predicated region
      $region21: #{block_forward.3} parent=19 // pred_check
        %p171 = pneg %p42
      $region22: #{block_forward.3} parent=19 // pred_check_branch
        %173 = sbr.rel (%p171) target = $region24
      $region23: #{block_forward.3} parent=19 // pred_region
        %p174 = scmp.lt.s32.totalorder %s17, 1
        %s175 = scalar_select %p174, %s17, 1
        %s176 = smul.addr %s175, 3
        %s177 = smul.addr %s176, 2
        %s178 = scalar_lea.vmem %s0, %s177
      $region24: #{block_forward.3} parent=19 // pred_fallthru
        _
      // Predicated region
      $region25: #{block_forward.3} parent=19 // pred_check
        %p179 = pneg %p89
      $region26: #{block_forward.3} parent=19 // pred_check_branch
        %181 = sbr.rel (%p179) target = $region28
      $region27: #{block_forward.3} parent=19 // pred_region
        %p182 = scmp.lt.s32.totalorder %s17, 1
        %s183 = scalar_select %p182, %s17, 1
        %s184 = smul.addr %s183, 4
        %s185 = smul.addr %s184, 8
        %s186 = scalar_lea.vmem %s2, %s185
      $region28: #{block_forward.3} parent=19 // pred_fallthru
        _
      // Predicated region
      $region29: #{block_forward.3} parent=19 // pred_check
        %p187 = pneg %p115
      $region30: #{block_forward.3} parent=19 // pred_check_branch
        %189 = sbr.rel (%p187) target = $region32
      $region31: #{block_forward.3} parent=19 // pred_region
        %p190 = scmp.lt.s32.totalorder %s17, 1
        %s191 = scalar_select %p190, %s17, 1
        %s192 = smul.addr %s191, 4
        %s193 = smul.addr %s192, 8
        %s194 = scalar_lea.vmem %s3, %s193
      $region32: #{block_forward.3} parent=19 // pred_fallthru
        _
    $region20: #{block_forward.3} parent=5 // pred_fallthru
      _
    %p195 = scmp.le.s32.totalorder 1, %s10
    %p196 = scmp.lt.s32.totalorder %s10, 3
    %p197 = pnand %p195, %p196
    %p198 = pneg %p197
    // Predicated region
    $region33: #{block_forward.3} parent=5 // pred_check
      _
    $region34: #{block_forward.3} parent=5 // pred_check_branch
      %200 = sbr.rel (%p197) target = $region36
    $region35: #{block_forward.3} parent=5 // pred_region
      %s201 = ssub.s32 %s10, 1
      %p202 = scmp.lt.s32.totalorder %s19, 1
      %s203 = scalar_select %p202, %s19, 1
      %s204 = smul.addr %s203, 3
      %s205 = smul.addr %s204, 2
      %s206 = scalar_lea.vmem %s0, %s205
      %p207 = pneg %p48
      %p208 = pneg %p45
      %p209 = pneg %p69
      %p210 = pneg %p66
      %p211 = scmp.lt.s32.totalorder %s19, 1
      %s212 = scalar_select %p211, %s19, 1
      %s213 = smul.addr %s212, 4
      %s214 = smul.addr %s213, 8
      %s215 = scalar_lea.vmem %s2, %s214
      %p216 = pneg %p95
      %p217 = pneg %p92
      %p218 = scmp.lt.s32.totalorder %s19, 1
      %s219 = scalar_select %p218, %s19, 1
      %s220 = smul.addr %s219, 4
      %s221 = smul.addr %s220, 8
      %s222 = scalar_lea.vmem %s3, %s221
      %p223 = pneg %p121
      %p224 = pneg %p118
      %p225 = pneg %p149
      %p226 = pneg %p146
      %s227 = smul.u32 2, %s20
      %p228 = scmp.lt.s32.totalorder %s19, 1
      %s229 = scalar_select %p228, %s19, 1
      %p230 = scmp.lt.s32.totalorder %s227, 1
      %s231 = scalar_select %p230, %s227, 1
      %s232 = smul.addr %s229, 8
      %s233 = sadd.s32 %s231, %s232
      %s234 = smul.addr %s233, 8
      %s235 = scalar_lea.vmem %s4, %s234
      %p236 = scmp.lt.s32.totalorder %s19, 1
      %s237 = scalar_select %p236, %s19, 1
      %s238 = smul.addr %s237, 3
      %s239 = smul.addr %s238, 2
      %s240 = scalar_lea.vmem %s0, %s239
      %p241 = scmp.lt.s32.totalorder %s19, 1
      %s242 = scalar_select %p241, %s19, 1
      %s243 = smul.addr %s242, 4
      %s244 = smul.addr %s243, 8
      %s245 = scalar_lea.vmem %s2, %s244
      %p246 = scmp.lt.s32.totalorder %s19, 1
      %s247 = scalar_select %p246, %s19, 1
      %s248 = smul.addr %s247, 4
      %s249 = smul.addr %s248, 8
      %s250 = scalar_lea.vmem %s3, %s249
      %s251 = smul.u32 2, %s20
      %p252 = scmp.lt.s32.totalorder %s19, 1
      %s253 = scalar_select %p252, %s19, 1
      %p254 = scmp.lt.s32.totalorder %s251, 1
      %s255 = scalar_select %p254, %s251, 1
      %s256 = smul.addr %s253, 8
      %s257 = sadd.s32 %s255, %s256
      %s258 = smul.addr %s257, 8
      %s259 = scalar_lea.vmem %s4, %s258
      %s260 = smul.u32 2, %s20
      %v262 = vlaneseq
      %v263 = vand.u32 %v262, 127
      %v264 = vadd.s32 %v263, 128
      %vm265 = vcmp.lt.s32.totalorder %v263, 0
      %v266 = vsub.s32 0, %v263
      %v267 = vsel %vm265, %v266, %v263
      %v268 = vshrl.u32 %v267, 4
      %v269 = vand.u32 %v267, 15
      %v270 = vsub.s32 0, %v269
      %v271 = vsel %vm265, %v270, %v269
      %vm272 = vcmp.lt.s32.totalorder %v264, 0
      %v273 = vsub.s32 0, %v264
      %v274 = vsel %vm272, %v273, %v264
      %v275 = vshrl.u32 %v274, 4
      %v276 = vand.u32 %v274, 15
      %v277 = vsub.s32 0, %v276
      %v278 = vsel %vm272, %v277, %v276
      %vm279 = vcmp.ne.s32.totalorder %v271, 0
      %vm280 = vcmp.ne.s32.totalorder %v278, 0
      %vm281 = vcmp.lt.s32.totalorder %v271, 0
      %vm282 = vcmp.lt.s32.totalorder %v278, 0
      %vm283 = vmand %vm281, %vm279
      %vm284 = vmand %vm282, %vm280
      %v285 = vadd.s32 %v271, 16
      %v286 = vadd.s32 %v278, 16
      %v287 = vsel %vm283, %v285, %v271
      %v288 = vsel %vm284, %v286, %v278
      %v289 = vld [vmem:[%s240] sm:$0x3f]
      %s290 = scalar_lea.vmem %s1, 16
      %v291 = vld [vmem:[%s290] sm:$0xf]
      %v292 = vld [vmem:[%s290 + $0x4] sm:$0xf]
      %v293 = vld [vmem:[%s290 + $0x8] sm:$0xf]
      %v294 = vld [vmem:[%s290 + $0xc] sm:$0xf]
      %s295 = scalar_lea.vmem %s1, 64
      %v296 = vld [vmem:[%s295] sm:$0xf]
      %v297 = vld [vmem:[%s295 + $0x4] sm:$0xf]
      %v298 = vld [vmem:[%s295 + $0x8] sm:$0xf]
      %v299 = vld [vmem:[%s295 + $0xc] sm:$0xf]
      %v304 = vunpack.c.l.b16 %v296
      %v305 = vunpack.c.l.b16 %v297
      %v306 = vunpack.c.l.b16 %v298
      %v307 = vunpack.c.l.b16 %v299
      %v308 = vpack.c.b16 %v305, %v304
      %v309 = vpack.c.b16 %v307, %v306
      %311 = vst [vmem:[#allocation1] ss:$4 sm:$0xff] %v289
      %v312 = vld.sshfl [vmem:[#allocation1] sm:$0xff pattern:$0x73625140]
      %v314 = vld.sshfl [vmem:[#allocation1 + $0x8] sm:$0xff pattern:$0x73625140]
      %v316 = vld.sshfl [vmem:[#allocation1 + $0x10] sm:$0xff pattern:$0x73625140]
      %318 = vrot.lane.b32.xlu0 %v312, 111
      %v319 = vpop.permute.xlu0 %318
      %320 = vrot.lane.b32.xlu0 %v314, 111
      %v321 = vpop.permute.xlu0 %320
      %322 = vrot.lane.b32.xlu0 %v316, 111
      %v323 = vpop.permute.xlu0 %322
      %vm324 = vcmask 908288
      %v325 = vsel %vm324, %v319, %v321
      %v326 = vsel %vm324, %v321, %v323
      %vm327 = vcmask 31744
      %v329 = vsel %vm327, %v308, 0
      %v332 = vsel %vm327, %v309, 0
      %vm334 = vcmask 1041408
      %v336 = vsel %vm334, %v325, 0
      %v339 = vsel %vm334, %v326, 0
      %341 = vmatpush.bf16.msra.mxu0 0
      %342 = vmatpush.bf16.msra.mxu0 0
      %343 = vmatpush.bf16.msra.mxu0 0
      %344 = vmatpush.bf16.msra.mxu0 0
      %345 = vmatpush.bf16.msra.mxu0 0
      %346 = vmatpush.bf16.msra.mxu0 0
      %347 = vmatpush.bf16.msra.mxu0 0
      %348 = vmatpush.bf16.msra.mxu0 %v336
      %349 = vmatmul.bf16.gmra.mxu0 %v329
      %v350 = vpop.f32.mrf.mxu0
      %v351 = vadd.f32 0.0, %v350
      %v352 = vpop.f32.mrf.mxu0
      %v353 = vadd.f32 0.0, %v352
      %354 = vmatmul.bf16.gmra.mxu0 %v332
      %v355 = vpop.f32.mrf.mxu0
      %v356 = vadd.f32 0.0, %v355
      %v357 = vpop.f32.mrf.mxu0
      %v358 = vadd.f32 0.0, %v357
      %359 = vdwg.mxu0
      %360 = vmatpush.bf16.msra.mxu0 0
      %361 = vmatpush.bf16.msra.mxu0 0
      %362 = vmatpush.bf16.msra.mxu0 0
      %363 = vmatpush.bf16.msra.mxu0 0
      %364 = vmatpush.bf16.msra.mxu0 0
      %365 = vmatpush.bf16.msra.mxu0 0
      %366 = vmatpush.bf16.msra.mxu0 0
      %367 = vmatpush.bf16.msra.mxu0 %v339
      %368 = vmatmul.bf16.gmra.mxu0 %v329
      %v369 = vpop.f32.mrf.mxu0
      %v370 = vadd.f32 0.0, %v369
      %v371 = vpop.f32.mrf.mxu0
      %v372 = vadd.f32 0.0, %v371
      %373 = vmatmul.bf16.gmra.mxu0 %v332
      %v374 = vpop.f32.mrf.mxu0
      %v375 = vadd.f32 0.0, %v374
      %v376 = vpop.f32.mrf.mxu0
      %v377 = vadd.f32 0.0, %v376
      %378 = vdwg.mxu0
      %v383 = vunpack.c.l.b16 %v291
      %v384 = vunpack.c.l.b16 %v292
      %v385 = vunpack.c.l.b16 %v293
      %v386 = vunpack.c.l.b16 %v294
      %v387 = vpack.c.b16 %v384, %v383
      %v388 = vpack.c.b16 %v386, %v385
      %389 = vst [vmem:[#allocation1] ss:$4 sm:$0xff] %v289
      %v390 = vld.sshfl [vmem:[#allocation1] sm:$0xff pattern:$0x73625140]
      %v392 = vld.sshfl [vmem:[#allocation1 + $0x8] sm:$0xff pattern:$0x73625140]
      %v394 = vld.sshfl [vmem:[#allocation1 + $0x10] sm:$0xff pattern:$0x73625140]
      %396 = vrot.lane.b32.xlu0 %v390, 127
      %v397 = vpop.permute.xlu0 %396
      %398 = vrot.lane.b32.xlu0 %v392, 127
      %v399 = vpop.permute.xlu0 %398
      %400 = vrot.lane.b32.xlu0 %v394, 127
      %v401 = vpop.permute.xlu0 %400
      %vm402 = vcmask 1039360
      %v403 = vsel %vm402, %v397, %v399
      %v404 = vsel %vm402, %v399, %v401
      %v406 = vsel %vm327, %v387, 0
      %v409 = vsel %vm327, %v388, 0
      %v412 = vsel %vm334, %v403, 0
      %v415 = vsel %vm334, %v404, 0
      %417 = vmatpush.bf16.msra.mxu0 0
      %418 = vmatpush.bf16.msra.mxu0 0
      %419 = vmatpush.bf16.msra.mxu0 0
      %420 = vmatpush.bf16.msra.mxu0 0
      %421 = vmatpush.bf16.msra.mxu0 0
      %422 = vmatpush.bf16.msra.mxu0 0
      %423 = vmatpush.bf16.msra.mxu0 0
      %424 = vmatpush.bf16.msra.mxu0 %v412
      %425 = vmatmul.bf16.gmra.mxu0 %v406
      %v426 = vpop.f32.mrf.mxu0
      %v427 = vadd.f32 %v351, %v426
      %v428 = vpop.f32.mrf.mxu0
      %v429 = vadd.f32 %v353, %v428
      %430 = vmatmul.bf16.gmra.mxu0 %v409
      %v431 = vpop.f32.mrf.mxu0
      %v432 = vadd.f32 %v356, %v431
      %v433 = vpop.f32.mrf.mxu0
      %v434 = vadd.f32 %v358, %v433
      %435 = vdwg.mxu0
      %436 = vmatpush.bf16.msra.mxu0 0
      %437 = vmatpush.bf16.msra.mxu0 0
      %438 = vmatpush.bf16.msra.mxu0 0
      %439 = vmatpush.bf16.msra.mxu0 0
      %440 = vmatpush.bf16.msra.mxu0 0
      %441 = vmatpush.bf16.msra.mxu0 0
      %442 = vmatpush.bf16.msra.mxu0 0
      %443 = vmatpush.bf16.msra.mxu0 %v415
      %444 = vmatmul.bf16.gmra.mxu0 %v406
      %v445 = vpop.f32.mrf.mxu0
      %v446 = vadd.f32 %v370, %v445
      %v447 = vpop.f32.mrf.mxu0
      %v448 = vadd.f32 %v372, %v447
      %449 = vmatmul.bf16.gmra.mxu0 %v409
      %v450 = vpop.f32.mrf.mxu0
      %v451 = vadd.f32 %v375, %v450
      %v452 = vpop.f32.mrf.mxu0
      %v453 = vadd.f32 %v377, %v452
      %454 = vdwg.mxu0
      %v455 = vld [vmem:[%s240] sm:$0x3f]
      %s456 = scalar_lea.vmem %s1, 112
      %v457 = vld [vmem:[%s456] sm:$0xf]
      %v458 = vld [vmem:[%s456 + $0x4] sm:$0xf]
      %v459 = vld [vmem:[%s456 + $0x8] sm:$0xf]
      %v460 = vld [vmem:[%s456 + $0xc] sm:$0xf]
      %v465 = vunpack.c.l.b16 %v457
      %v466 = vunpack.c.l.b16 %v458
      %v467 = vunpack.c.l.b16 %v459
      %v468 = vunpack.c.l.b16 %v460
      %v469 = vpack.c.b16 %v466, %v465
      %v470 = vpack.c.b16 %v468, %v467
      %472 = vst [vmem:[#allocation1] ss:$4 sm:$0xff] %v455
      %v473 = vld.sshfl [vmem:[#allocation1] sm:$0xff pattern:$0x73625140]
      %v475 = vld.sshfl [vmem:[#allocation1 + $0x8] sm:$0xff pattern:$0x73625140]
      %v477 = vld.sshfl [vmem:[#allocation1 + $0x10] sm:$0xff pattern:$0x73625140]
      %479 = vrot.lane.b32.xlu0 %v473, 95
      %v480 = vpop.permute.xlu0 %479
      %481 = vrot.lane.b32.xlu0 %v475, 95
      %v482 = vpop.permute.xlu0 %481
      %483 = vrot.lane.b32.xlu0 %v477, 95
      %v484 = vpop.permute.xlu0 %483
      %vm485 = vcmask 777216
      %v486 = vsel %vm485, %v480, %v482
      %v487 = vsel %vm485, %v482, %v484
      %v489 = vsel %vm327, %v469, 0
      %v492 = vsel %vm327, %v470, 0
      %v495 = vsel %vm334, %v486, 0
      %v498 = vsel %vm334, %v487, 0
      %500 = vmatpush.bf16.msra.mxu0 0
      %501 = vmatpush.bf16.msra.mxu0 0
      %502 = vmatpush.bf16.msra.mxu0 0
      %503 = vmatpush.bf16.msra.mxu0 0
      %504 = vmatpush.bf16.msra.mxu0 0
      %505 = vmatpush.bf16.msra.mxu0 0
      %506 = vmatpush.bf16.msra.mxu0 0
      %507 = vmatpush.bf16.msra.mxu0 %v495
      %508 = vmatmul.bf16.gmra.mxu0 %v489
      %v509 = vpop.f32.mrf.mxu0
      %v510 = vadd.f32 0.0, %v509
      %v511 = vpop.f32.mrf.mxu0
      %v512 = vadd.f32 0.0, %v511
      %513 = vmatmul.bf16.gmra.mxu0 %v492
      %v514 = vpop.f32.mrf.mxu0
      %v515 = vadd.f32 0.0, %v514
      %v516 = vpop.f32.mrf.mxu0
      %v517 = vadd.f32 0.0, %v516
      %518 = vdwg.mxu0
      %519 = vmatpush.bf16.msra.mxu0 0
      %520 = vmatpush.bf16.msra.mxu0 0
      %521 = vmatpush.bf16.msra.mxu0 0
      %522 = vmatpush.bf16.msra.mxu0 0
      %523 = vmatpush.bf16.msra.mxu0 0
      %524 = vmatpush.bf16.msra.mxu0 0
      %525 = vmatpush.bf16.msra.mxu0 0
      %526 = vmatpush.bf16.msra.mxu0 %v498
      %527 = vmatmul.bf16.gmra.mxu0 %v489
      %v528 = vpop.f32.mrf.mxu0
      %v529 = vadd.f32 0.0, %v528
      %v530 = vpop.f32.mrf.mxu0
      %v531 = vadd.f32 0.0, %v530
      %532 = vmatmul.bf16.gmra.mxu0 %v492
      %v533 = vpop.f32.mrf.mxu0
      %v534 = vadd.f32 0.0, %v533
      %v535 = vpop.f32.mrf.mxu0
      %v536 = vadd.f32 0.0, %v535
      %537 = vdwg.mxu0
      %v538 = vadd.f32 %v427, %v510
      %v539 = vadd.f32 %v446, %v529
      %v540 = vadd.f32 %v429, %v512
      %v541 = vadd.f32 %v448, %v531
      %v542 = vadd.f32 %v432, %v515
      %v543 = vadd.f32 %v451, %v534
      %v544 = vadd.f32 %v434, %v517
      %v545 = vadd.f32 %v453, %v536
      %vm546 = vcmp.ne.s32.totalorder %v287, 0
      %vm547 = vcmp.ne.s32.totalorder %v288, 0
      %v548 = vld [vmem:[%s240] sm:$0xf]
      %v549 = vld [vmem:[%s1] sm:$0xf]
      %v550 = vld [vmem:[%s1 + $0x4] sm:$0xf]
      %v551 = vld [vmem:[%s1 + $0x8] sm:$0xf]
      %v552 = vld [vmem:[%s1 + $0xc] sm:$0xf]
      %v553 = vld [vmem:[%s240] sm:$0x3f]
      %s554 = scalar_lea.vmem %s1, 48
      %v555 = vld [vmem:[%s554] sm:$0xf]
      %v556 = vld [vmem:[%s554 + $0x4] sm:$0xf]
      %v557 = vld [vmem:[%s554 + $0x8] sm:$0xf]
      %v558 = vld [vmem:[%s554 + $0xc] sm:$0xf]
      %v563 = vunpack.c.l.b16 %v555
      %v564 = vunpack.c.l.b16 %v556
      %v565 = vunpack.c.l.b16 %v557
      %v566 = vunpack.c.l.b16 %v558
      %v567 = vpack.c.b16 %v564, %v563
      %v568 = vpack.c.b16 %v566, %v565
      %570 = vst [vmem:[#allocation1] ss:$4 sm:$0xff] %v553
      %v571 = vld.sshfl [vmem:[#allocation1] sm:$0xff pattern:$0x73625140]
      %v573 = vld.sshfl [vmem:[#allocation1 + $0x8] sm:$0xff pattern:$0x73625140]
      %v575 = vld.sshfl [vmem:[#allocation1 + $0x10] sm:$0xff pattern:$0x73625140]
      %577 = vrot.lane.b32.xlu0 %v571, 112
      %v578 = vpop.permute.xlu0 %577
      %579 = vrot.lane.b32.xlu0 %v573, 112
      %v580 = vpop.permute.xlu0 %579
      %581 = vrot.lane.b32.xlu0 %v575, 112
      %v582 = vpop.permute.xlu0 %581
      %vm583 = vcmask 916480
      %v584 = vsel %vm583, %v578, %v580
      %v585 = vsel %vm583, %v580, %v582
      %v587 = vsel %vm327, %v567, 0
      %v590 = vsel %vm327, %v568, 0
      %v593 = vsel %vm334, %v584, 0
      %v596 = vsel %vm334, %v585, 0
      %598 = vmatpush.bf16.msra.mxu0 0
      %599 = vmatpush.bf16.msra.mxu0 0
      %600 = vmatpush.bf16.msra.mxu0 0
      %601 = vmatpush.bf16.msra.mxu0 0
      %602 = vmatpush.bf16.msra.mxu0 0
      %603 = vmatpush.bf16.msra.mxu0 0
      %604 = vmatpush.bf16.msra.mxu0 0
      %605 = vmatpush.bf16.msra.mxu0 %v593
      %606 = vmatmul.bf16.gmra.mxu0 %v587
      %v607 = vpop.f32.mrf.mxu0
      %v608 = vadd.f32 0.0, %v607
      %v609 = vpop.f32.mrf.mxu0
      %v610 = vadd.f32 0.0, %v609
      %611 = vmatmul.bf16.gmra.mxu0 %v590
      %v612 = vpop.f32.mrf.mxu0
      %v613 = vadd.f32 0.0, %v612
      %v614 = vpop.f32.mrf.mxu0
      %v615 = vadd.f32 0.0, %v614
      %616 = vdwg.mxu0
      %617 = vmatpush.bf16.msra.mxu0 0
      %618 = vmatpush.bf16.msra.mxu0 0
      %619 = vmatpush.bf16.msra.mxu0 0
      %620 = vmatpush.bf16.msra.mxu0 0
      %621 = vmatpush.bf16.msra.mxu0 0
      %622 = vmatpush.bf16.msra.mxu0 0
      %623 = vmatpush.bf16.msra.mxu0 0
      %624 = vmatpush.bf16.msra.mxu0 %v596
      %625 = vmatmul.bf16.gmra.mxu0 %v587
      %v626 = vpop.f32.mrf.mxu0
      %v627 = vadd.f32 0.0, %v626
      %v628 = vpop.f32.mrf.mxu0
      %v629 = vadd.f32 0.0, %v628
      %630 = vmatmul.bf16.gmra.mxu0 %v590
      %v631 = vpop.f32.mrf.mxu0
      %v632 = vadd.f32 0.0, %v631
      %v633 = vpop.f32.mrf.mxu0
      %v634 = vadd.f32 0.0, %v633
      %635 = vdwg.mxu0
      %v640 = vunpack.c.l.b16 %v549
      %v641 = vunpack.c.l.b16 %v550
      %v642 = vunpack.c.l.b16 %v551
      %v643 = vunpack.c.l.b16 %v552
      %v644 = vpack.c.b16 %v641, %v640
      %v645 = vpack.c.b16 %v643, %v642
      %647 = vst [vmem:[#allocation1] ss:$4 sm:$0xff] %v548
      %v648 = vld.sshfl [vmem:[#allocation1] sm:$0xff pattern:$0x73625140]
      %v649 = vld.sshfl [vmem:[#allocation1 + $0x8] sm:$0xff pattern:$0x73625140]
      %v651 = vsel %vm327, %v644, 0
      %v654 = vsel %vm327, %v645, 0
      %v656 = vsel %vm334, %v648, 0
      %v658 = vsel %vm334, %v649, 0
      %660 = vmatpush.bf16.msra.mxu0 0
      %661 = vmatpush.bf16.msra.mxu0 0
      %662 = vmatpush.bf16.msra.mxu0 0
      %663 = vmatpush.bf16.msra.mxu0 0
      %664 = vmatpush.bf16.msra.mxu0 0
      %665 = vmatpush.bf16.msra.mxu0 0
      %666 = vmatpush.bf16.msra.mxu0 0
      %667 = vmatpush.bf16.msra.mxu0 %v656
      %668 = vmatmul.bf16.gmra.mxu0 %v651
      %v669 = vpop.f32.mrf.mxu0
      %v670 = vadd.f32 %v608, %v669
      %v671 = vpop.f32.mrf.mxu0
      %v672 = vadd.f32 %v610, %v671
      %673 = vmatmul.bf16.gmra.mxu0 %v654
      %v674 = vpop.f32.mrf.mxu0
      %v675 = vadd.f32 %v613, %v674
      %v676 = vpop.f32.mrf.mxu0
      %v677 = vadd.f32 %v615, %v676
      %678 = vdwg.mxu0
      %679 = vmatpush.bf16.msra.mxu0 0
      %680 = vmatpush.bf16.msra.mxu0 0
      %681 = vmatpush.bf16.msra.mxu0 0
      %682 = vmatpush.bf16.msra.mxu0 0
      %683 = vmatpush.bf16.msra.mxu0 0
      %684 = vmatpush.bf16.msra.mxu0 0
      %685 = vmatpush.bf16.msra.mxu0 0
      %686 = vmatpush.bf16.msra.mxu0 %v658
      %687 = vmatmul.bf16.gmra.mxu0 %v651
      %v688 = vpop.f32.mrf.mxu0
      %v689 = vadd.f32 %v627, %v688
      %v690 = vpop.f32.mrf.mxu0
      %v691 = vadd.f32 %v629, %v690
      %692 = vmatmul.bf16.gmra.mxu0 %v654
      %v693 = vpop.f32.mrf.mxu0
      %v694 = vadd.f32 %v632, %v693
      %v695 = vpop.f32.mrf.mxu0
      %v696 = vadd.f32 %v634, %v695
      %697 = vdwg.mxu0
      %v698 = vld [vmem:[%s240] sm:$0x3f]
      %s699 = scalar_lea.vmem %s1, 96
      %v700 = vld [vmem:[%s699] sm:$0xf]
      %v701 = vld [vmem:[%s699 + $0x4] sm:$0xf]
      %v702 = vld [vmem:[%s699 + $0x8] sm:$0xf]
      %v703 = vld [vmem:[%s699 + $0xc] sm:$0xf]
      %v708 = vunpack.c.l.b16 %v700
      %v709 = vunpack.c.l.b16 %v701
      %v710 = vunpack.c.l.b16 %v702
      %v711 = vunpack.c.l.b16 %v703
      %v712 = vpack.c.b16 %v709, %v708
      %v713 = vpack.c.b16 %v711, %v710
      %715 = vst [vmem:[#allocation1] ss:$4 sm:$0xff] %v698
      %v716 = vld.sshfl [vmem:[#allocation1] sm:$0xff pattern:$0x73625140]
      %v718 = vld.sshfl [vmem:[#allocation1 + $0x8] sm:$0xff pattern:$0x73625140]
      %v720 = vld.sshfl [vmem:[#allocation1 + $0x10] sm:$0xff pattern:$0x73625140]
      %722 = vrot.lane.b32.xlu0 %v716, 96
      %v723 = vpop.permute.xlu0 %722
      %724 = vrot.lane.b32.xlu0 %v718, 96
      %v725 = vpop.permute.xlu0 %724
      %726 = vrot.lane.b32.xlu0 %v720, 96
      %v727 = vpop.permute.xlu0 %726
      %vm728 = vcmask 785408
      %v729 = vsel %vm728, %v723, %v725
      %v730 = vsel %vm728, %v725, %v727
      %v732 = vsel %vm327, %v712, 0
      %v735 = vsel %vm327, %v713, 0
      %v738 = vsel %vm334, %v729, 0
      %v741 = vsel %vm334, %v730, 0
      %743 = vmatpush.bf16.msra.mxu0 0
      %744 = vmatpush.bf16.msra.mxu0 0
      %745 = vmatpush.bf16.msra.mxu0 0
      %746 = vmatpush.bf16.msra.mxu0 0
      %747 = vmatpush.bf16.msra.mxu0 0
      %748 = vmatpush.bf16.msra.mxu0 0
      %749 = vmatpush.bf16.msra.mxu0 0
      %750 = vmatpush.bf16.msra.mxu0 %v738
      %751 = vmatmul.bf16.gmra.mxu0 %v732
      %v752 = vpop.f32.mrf.mxu0
      %v753 = vadd.f32 0.0, %v752
      %v754 = vpop.f32.mrf.mxu0
      %v755 = vadd.f32 0.0, %v754
      %756 = vmatmul.bf16.gmra.mxu0 %v735
      %v757 = vpop.f32.mrf.mxu0
      %v758 = vadd.f32 0.0, %v757
      %v759 = vpop.f32.mrf.mxu0
      %v760 = vadd.f32 0.0, %v759
      %761 = vdwg.mxu0
      %762 = vmatpush.bf16.msra.mxu0 0
      %763 = vmatpush.bf16.msra.mxu0 0
      %764 = vmatpush.bf16.msra.mxu0 0
      %765 = vmatpush.bf16.msra.mxu0 0
      %766 = vmatpush.bf16.msra.mxu0 0
      %767 = vmatpush.bf16.msra.mxu0 0
      %768 = vmatpush.bf16.msra.mxu0 0
      %769 = vmatpush.bf16.msra.mxu0 %v741
      %770 = vmatmul.bf16.gmra.mxu0 %v732
      %v771 = vpop.f32.mrf.mxu0
      %v772 = vadd.f32 0.0, %v771
      %v773 = vpop.f32.mrf.mxu0
      %v774 = vadd.f32 0.0, %v773
      %775 = vmatmul.bf16.gmra.mxu0 %v735
      %v776 = vpop.f32.mrf.mxu0
      %v777 = vadd.f32 0.0, %v776
      %v778 = vpop.f32.mrf.mxu0
      %v779 = vadd.f32 0.0, %v778
      %780 = vdwg.mxu0
      %v781 = vadd.f32 %v670, %v753
      %v782 = vadd.f32 %v689, %v772
      %v783 = vadd.f32 %v672, %v755
      %v784 = vadd.f32 %v691, %v774
      %v785 = vadd.f32 %v675, %v758
      %v786 = vadd.f32 %v694, %v777
      %v787 = vadd.f32 %v677, %v760
      %v788 = vadd.f32 %v696, %v779
      %v789 = vsel %vm546, 1, 0
      %v790 = vsel %vm547, 1, 0
      %vm791 = vcmp.eq.s32.totalorder %v789, 1
      %vm792 = vcmp.eq.s32.totalorder %v790, 1
      %v793 = vsel %vm791, %v781, 0.0
      %v794 = vsel %vm792, %v782, 0.0
      %v795 = vsel %vm791, %v783, 0.0
      %v796 = vsel %vm792, %v784, 0.0
      %v797 = vsel %vm791, %v785, 0.0
      %v798 = vsel %vm792, %v786, 0.0
      %v799 = vsel %vm791, %v787, 0.0
      %v800 = vsel %vm792, %v788, 0.0
      %v801 = vadd.f32 %v538, %v793
      %v802 = vadd.f32 %v539, %v794
      %v803 = vadd.f32 %v540, %v795
      %v804 = vadd.f32 %v541, %v796
      %v805 = vadd.f32 %v542, %v797
      %v806 = vadd.f32 %v543, %v798
      %v807 = vadd.f32 %v544, %v799
      %v808 = vadd.f32 %v545, %v800
      %vm809 = vcmp.ne.s32.totalorder %v287, 15
      %vm810 = vcmp.ne.s32.totalorder %v288, 15
      %v811 = vld [vmem:[%s240] sm:$0x3f]
      %s812 = scalar_lea.vmem %s1, 32
      %v813 = vld [vmem:[%s812] sm:$0xf]
      %v814 = vld [vmem:[%s812 + $0x4] sm:$0xf]
      %v815 = vld [vmem:[%s812 + $0x8] sm:$0xf]
      %v816 = vld [vmem:[%s812 + $0xc] sm:$0xf]
      %s817 = scalar_lea.vmem %s1, 80
      %v818 = vld [vmem:[%s817] sm:$0xf]
      %v819 = vld [vmem:[%s817 + $0x4] sm:$0xf]
      %v820 = vld [vmem:[%s817 + $0x8] sm:$0xf]
      %v821 = vld [vmem:[%s817 + $0xc] sm:$0xf]
      %v826 = vunpack.c.l.b16 %v818
      %v827 = vunpack.c.l.b16 %v819
      %v828 = vunpack.c.l.b16 %v820
      %v829 = vunpack.c.l.b16 %v821
      %v830 = vpack.c.b16 %v827, %v826
      %v831 = vpack.c.b16 %v829, %v828
      %833 = vst [vmem:[#allocation1] ss:$4 sm:$0xff] %v811
      %v834 = vld.sshfl [vmem:[#allocation1] sm:$0xff pattern:$0x73625140]
      %v836 = vld.sshfl [vmem:[#allocation1 + $0x8] sm:$0xff pattern:$0x73625140]
      %v838 = vld.sshfl [vmem:[#allocation1 + $0x10] sm:$0xff pattern:$0x73625140]
      %840 = vrot.lane.b32.xlu0 %v834, 110
      %v841 = vpop.permute.xlu0 %840
      %842 = vrot.lane.b32.xlu0 %v836, 110
      %v843 = vpop.permute.xlu0 %842
      %844 = vrot.lane.b32.xlu0 %v838, 110
      %v845 = vpop.permute.xlu0 %844
      %vm846 = vcmask 900096
      %v847 = vsel %vm846, %v841, %v843
      %v848 = vsel %vm846, %v843, %v845
      %v850 = vsel %vm327, %v830, 0
      %v853 = vsel %vm327, %v831, 0
      %v856 = vsel %vm334, %v847, 0
      %v859 = vsel %vm334, %v848, 0
      %861 = vmatpush.bf16.msra.mxu0 0
      %862 = vmatpush.bf16.msra.mxu0 0
      %863 = vmatpush.bf16.msra.mxu0 0
      %864 = vmatpush.bf16.msra.mxu0 0
      %865 = vmatpush.bf16.msra.mxu0 0
      %866 = vmatpush.bf16.msra.mxu0 0
      %867 = vmatpush.bf16.msra.mxu0 0
      %868 = vmatpush.bf16.msra.mxu0 %v856
      %869 = vmatmul.bf16.gmra.mxu0 %v850
      %v870 = vpop.f32.mrf.mxu0
      %v871 = vadd.f32 0.0, %v870
      %v872 = vpop.f32.mrf.mxu0
      %v873 = vadd.f32 0.0, %v872
      %874 = vmatmul.bf16.gmra.mxu0 %v853
      %v875 = vpop.f32.mrf.mxu0
      %v876 = vadd.f32 0.0, %v875
      %v877 = vpop.f32.mrf.mxu0
      %v878 = vadd.f32 0.0, %v877
      %879 = vdwg.mxu0
      %880 = vmatpush.bf16.msra.mxu0 0
      %881 = vmatpush.bf16.msra.mxu0 0
      %882 = vmatpush.bf16.msra.mxu0 0
      %883 = vmatpush.bf16.msra.mxu0 0
      %884 = vmatpush.bf16.msra.mxu0 0
      %885 = vmatpush.bf16.msra.mxu0 0
      %886 = vmatpush.bf16.msra.mxu0 0
      %887 = vmatpush.bf16.msra.mxu0 %v859
      %888 = vmatmul.bf16.gmra.mxu0 %v850
      %v889 = vpop.f32.mrf.mxu0
      %v890 = vadd.f32 0.0, %v889
      %v891 = vpop.f32.mrf.mxu0
      %v892 = vadd.f32 0.0, %v891
      %893 = vmatmul.bf16.gmra.mxu0 %v853
      %v894 = vpop.f32.mrf.mxu0
      %v895 = vadd.f32 0.0, %v894
      %v896 = vpop.f32.mrf.mxu0
      %v897 = vadd.f32 0.0, %v896
      %898 = vdwg.mxu0
      %v903 = vunpack.c.l.b16 %v813
      %v904 = vunpack.c.l.b16 %v814
      %v905 = vunpack.c.l.b16 %v815
      %v906 = vunpack.c.l.b16 %v816
      %v907 = vpack.c.b16 %v904, %v903
      %v908 = vpack.c.b16 %v906, %v905
      %909 = vst [vmem:[#allocation1] ss:$4 sm:$0xff] %v811
      %v910 = vld.sshfl [vmem:[#allocation1] sm:$0xff pattern:$0x73625140]
      %v912 = vld.sshfl [vmem:[#allocation1 + $0x8] sm:$0xff pattern:$0x73625140]
      %v914 = vld.sshfl [vmem:[#allocation1 + $0x10] sm:$0xff pattern:$0x73625140]
      %916 = vrot.lane.b32.xlu0 %v910, 126
      %v917 = vpop.permute.xlu0 %916
      %918 = vrot.lane.b32.xlu0 %v912, 126
      %v919 = vpop.permute.xlu0 %918
      %920 = vrot.lane.b32.xlu0 %v914, 126
      %v921 = vpop.permute.xlu0 %920
      %vm922 = vcmask 1031168
      %v923 = vsel %vm922, %v917, %v919
      %v924 = vsel %vm922, %v919, %v921
      %v926 = vsel %vm327, %v907, 0
      %v929 = vsel %vm327, %v908, 0
      %v932 = vsel %vm334, %v923, 0
      %v935 = vsel %vm334, %v924, 0
      %937 = vmatpush.bf16.msra.mxu0 0
      %938 = vmatpush.bf16.msra.mxu0 0
      %939 = vmatpush.bf16.msra.mxu0 0
      %940 = vmatpush.bf16.msra.mxu0 0
      %941 = vmatpush.bf16.msra.mxu0 0
      %942 = vmatpush.bf16.msra.mxu0 0
      %943 = vmatpush.bf16.msra.mxu0 0
      %944 = vmatpush.bf16.msra.mxu0 %v932
      %945 = vmatmul.bf16.gmra.mxu0 %v926
      %v946 = vpop.f32.mrf.mxu0
      %v947 = vadd.f32 %v871, %v946
      %v948 = vpop.f32.mrf.mxu0
      %v949 = vadd.f32 %v873, %v948
      %950 = vmatmul.bf16.gmra.mxu0 %v929
      %v951 = vpop.f32.mrf.mxu0
      %v952 = vadd.f32 %v876, %v951
      %v953 = vpop.f32.mrf.mxu0
      %v954 = vadd.f32 %v878, %v953
      %955 = vdwg.mxu0
      %956 = vmatpush.bf16.msra.mxu0 0
      %957 = vmatpush.bf16.msra.mxu0 0
      %958 = vmatpush.bf16.msra.mxu0 0
      %959 = vmatpush.bf16.msra.mxu0 0
      %960 = vmatpush.bf16.msra.mxu0 0
      %961 = vmatpush.bf16.msra.mxu0 0
      %962 = vmatpush.bf16.msra.mxu0 0
      %963 = vmatpush.bf16.msra.mxu0 %v935
      %964 = vmatmul.bf16.gmra.mxu0 %v926
      %v965 = vpop.f32.mrf.mxu0
      %v966 = vadd.f32 %v890, %v965
      %v967 = vpop.f32.mrf.mxu0
      %v968 = vadd.f32 %v892, %v967
      %969 = vmatmul.bf16.gmra.mxu0 %v929
      %v970 = vpop.f32.mrf.mxu0
      %v971 = vadd.f32 %v895, %v970
      %v972 = vpop.f32.mrf.mxu0
      %v973 = vadd.f32 %v897, %v972
      %974 = vdwg.mxu0
      %v975 = vld [vmem:[%s240] sm:$0x3f]
      %s976 = scalar_lea.vmem %s1, 128
      %v977 = vld [vmem:[%s976] sm:$0xf]
      %v978 = vld [vmem:[%s976 + $0x4] sm:$0xf]
      %v979 = vld [vmem:[%s976 + $0x8] sm:$0xf]
      %v980 = vld [vmem:[%s976 + $0xc] sm:$0xf]
      %v985 = vunpack.c.l.b16 %v977
      %v986 = vunpack.c.l.b16 %v978
      %v987 = vunpack.c.l.b16 %v979
      %v988 = vunpack.c.l.b16 %v980
      %v989 = vpack.c.b16 %v986, %v985
      %v990 = vpack.c.b16 %v988, %v987
      %992 = vst [vmem:[#allocation1] ss:$4 sm:$0xff] %v975
      %v993 = vld.sshfl [vmem:[#allocation1] sm:$0xff pattern:$0x73625140]
      %v995 = vld.sshfl [vmem:[#allocation1 + $0x8] sm:$0xff pattern:$0x73625140]
      %v997 = vld.sshfl [vmem:[#allocation1 + $0x10] sm:$0xff pattern:$0x73625140]
      %999 = vrot.lane.b32.xlu0 %v993, 94
      %v1000 = vpop.permute.xlu0 %999
      %1001 = vrot.lane.b32.xlu0 %v995, 94
      %v1002 = vpop.permute.xlu0 %1001
      %1003 = vrot.lane.b32.xlu0 %v997, 94
      %v1004 = vpop.permute.xlu0 %1003
      %vm1005 = vcmask 769024
      %v1006 = vsel %vm1005, %v1000, %v1002
      %v1007 = vsel %vm1005, %v1002, %v1004
      %v1009 = vsel %vm327, %v989, 0
      %v1012 = vsel %vm327, %v990, 0
      %v1015 = vsel %vm334, %v1006, 0
      %v1018 = vsel %vm334, %v1007, 0
      %1020 = vmatpush.bf16.msra.mxu0 0
      %1021 = vmatpush.bf16.msra.mxu0 0
      %1022 = vmatpush.bf16.msra.mxu0 0
      %1023 = vmatpush.bf16.msra.mxu0 0
      %1024 = vmatpush.bf16.msra.mxu0 0
      %1025 = vmatpush.bf16.msra.mxu0 0
      %1026 = vmatpush.bf16.msra.mxu0 0
      %1027 = vmatpush.bf16.msra.mxu0 %v1015
      %1028 = vmatmul.bf16.gmra.mxu0 %v1009
      %v1029 = vpop.f32.mrf.mxu0
      %v1030 = vadd.f32 0.0, %v1029
      %v1031 = vpop.f32.mrf.mxu0
      %v1032 = vadd.f32 0.0, %v1031
      %1033 = vmatmul.bf16.gmra.mxu0 %v1012
      %v1034 = vpop.f32.mrf.mxu0
      %v1035 = vadd.f32 0.0, %v1034
      %v1036 = vpop.f32.mrf.mxu0
      %v1037 = vadd.f32 0.0, %v1036
      %1038 = vdwg.mxu0
      %1039 = vmatpush.bf16.msra.mxu0 0
      %1040 = vmatpush.bf16.msra.mxu0 0
      %1041 = vmatpush.bf16.msra.mxu0 0
      %1042 = vmatpush.bf16.msra.mxu0 0
      %1043 = vmatpush.bf16.msra.mxu0 0
      %1044 = vmatpush.bf16.msra.mxu0 0
      %1045 = vmatpush.bf16.msra.mxu0 0
      %1046 = vmatpush.bf16.msra.mxu0 %v1018
      %1047 = vmatmul.bf16.gmra.mxu0 %v1009
      %v1048 = vpop.f32.mrf.mxu0
      %v1049 = vadd.f32 0.0, %v1048
      %v1050 = vpop.f32.mrf.mxu0
      %v1051 = vadd.f32 0.0, %v1050
      %1052 = vmatmul.bf16.gmra.mxu0 %v1012
      %v1053 = vpop.f32.mrf.mxu0
      %v1054 = vadd.f32 0.0, %v1053
      %v1055 = vpop.f32.mrf.mxu0
      %v1056 = vadd.f32 0.0, %v1055
      %1057 = vdwg.mxu0
      %v1058 = vadd.f32 %v947, %v1030
      %v1059 = vadd.f32 %v966, %v1049
      %v1060 = vadd.f32 %v949, %v1032
      %v1061 = vadd.f32 %v968, %v1051
      %v1062 = vadd.f32 %v952, %v1035
      %v1063 = vadd.f32 %v971, %v1054
      %v1064 = vadd.f32 %v954, %v1037
      %v1065 = vadd.f32 %v973, %v1056
      %v1066 = vsel %vm809, 1, 0
      %v1067 = vsel %vm810, 1, 0
      %vm1068 = vcmp.eq.s32.totalorder %v1066, 1
      %vm1069 = vcmp.eq.s32.totalorder %v1067, 1
      %v1070 = vsel %vm1068, %v1058, 0.0
      %v1071 = vsel %vm1069, %v1059, 0.0
      %v1072 = vsel %vm1068, %v1060, 0.0
      %v1073 = vsel %vm1069, %v1061, 0.0
      %v1074 = vsel %vm1068, %v1062, 0.0
      %v1075 = vsel %vm1069, %v1063, 0.0
      %v1076 = vsel %vm1068, %v1064, 0.0
      %v1077 = vsel %vm1069, %v1065, 0.0
      %v1078 = vadd.f32 %v801, %v1070
      %v1079 = vadd.f32 %v802, %v1071
      %v1080 = vadd.f32 %v803, %v1072
      %v1081 = vadd.f32 %v804, %v1073
      %v1082 = vadd.f32 %v805, %v1074
      %v1083 = vadd.f32 %v806, %v1075
      %v1084 = vadd.f32 %v807, %v1076
      %v1085 = vadd.f32 %v808, %v1077
      %v1086 = vld [vmem:[%s245] sm:$0xff]
      %v1087 = vld [vmem:[%s245 + $0x8] sm:$0xff]
      %v1088 = vld [vmem:[%s245 + $0x10] sm:$0xff]
      %v1089 = vld [vmem:[%s245 + $0x18] sm:$0xff]
      %1091 = vset.pattern.permute.xlu0 0
      %1092 = vperm.xlu0 %1091, %v1086
      %v1093 = vpop.permute.xlu0 %1092
      %1096 = vset.pattern.permute.xlu0 0
      %1097 = vperm.xlu0 %1096, %v1087
      %v1098 = vpop.permute.xlu0 %1097
      %1101 = vset.pattern.permute.xlu0 0
      %1102 = vperm.xlu0 %1101, %v1088
      %v1103 = vpop.permute.xlu0 %1102
      %1106 = vset.pattern.permute.xlu0 0
      %1107 = vperm.xlu0 %1106, %v1089
      %v1108 = vpop.permute.xlu0 %1107
      %v1110 = vmul.f32 %v1078, %v1093
      %v1111 = vmul.f32 %v1079, %v1093
      %v1112 = vmul.f32 %v1080, %v1098
      %v1113 = vmul.f32 %v1081, %v1098
      %v1114 = vmul.f32 %v1082, %v1103
      %v1115 = vmul.f32 %v1083, %v1103
      %v1116 = vmul.f32 %v1084, %v1108
      %v1117 = vmul.f32 %v1085, %v1108
      %v1118 = vld [vmem:[%s250] sm:$0xff]
      %v1119 = vld [vmem:[%s250 + $0x8] sm:$0xff]
      %v1120 = vld [vmem:[%s250 + $0x10] sm:$0xff]
      %v1121 = vld [vmem:[%s250 + $0x18] sm:$0xff]
      %1123 = vset.pattern.permute.xlu0 0
      %1124 = vperm.xlu0 %1123, %v1118
      %v1125 = vpop.permute.xlu0 %1124
      %1128 = vset.pattern.permute.xlu0 0
      %1129 = vperm.xlu0 %1128, %v1119
      %v1130 = vpop.permute.xlu0 %1129
      %1133 = vset.pattern.permute.xlu0 0
      %1134 = vperm.xlu0 %1133, %v1120
      %v1135 = vpop.permute.xlu0 %1134
      %1138 = vset.pattern.permute.xlu0 0
      %1139 = vperm.xlu0 %1138, %v1121
      %v1140 = vpop.permute.xlu0 %1139
      %v1142 = vadd.f32 %v1110, %v1125
      %v1143 = vadd.f32 %v1111, %v1125
      %v1144 = vadd.f32 %v1112, %v1130
      %v1145 = vadd.f32 %v1113, %v1130
      %v1146 = vadd.f32 %v1114, %v1135
      %v1147 = vadd.f32 %v1115, %v1135
      %v1148 = vadd.f32 %v1116, %v1140
      %v1149 = vadd.f32 %v1117, %v1140
      %v1150 = vsub.f32 0.0, %v1142
      %v1151 = vsub.f32 0.0, %v1143
      %v1152 = vsub.f32 0.0, %v1144
      %v1153 = vsub.f32 0.0, %v1145
      %v1154 = vsub.f32 0.0, %v1146
      %v1155 = vsub.f32 0.0, %v1147
      %v1156 = vsub.f32 0.0, %v1148
      %v1157 = vsub.f32 0.0, %v1149
      %v1158 = vmul.f32 %v1150, 1.442695
      %v1159 = vpow.pop %v1158
      %v1160 = vmul.f32 %v1151, 1.442695
      %v1161 = vpow.pop %v1160
      %v1162 = vmul.f32 %v1152, 1.442695
      %v1163 = vpow.pop %v1162
      %v1164 = vmul.f32 %v1153, 1.442695
      %v1165 = vpow.pop %v1164
      %v1166 = vmul.f32 %v1154, 1.442695
      %v1167 = vpow.pop %v1166
      %v1168 = vmul.f32 %v1155, 1.442695
      %v1169 = vpow.pop %v1168
      %v1170 = vmul.f32 %v1156, 1.442695
      %v1171 = vpow.pop %v1170
      %v1172 = vmul.f32 %v1157, 1.442695
      %v1173 = vpow.pop %v1172
      %v1174 = vadd.f32 %v1159, 1.0
      %v1175 = vadd.f32 %v1161, 1.0
      %v1176 = vadd.f32 %v1163, 1.0
      %v1177 = vadd.f32 %v1165, 1.0
      %v1178 = vadd.f32 %v1167, 1.0
      %v1179 = vadd.f32 %v1169, 1.0
      %v1180 = vadd.f32 %v1171, 1.0
      %v1181 = vadd.f32 %v1173, 1.0
      %v1182 = vrcp.pop %v1174
      %v1183 = vrcp.pop %v1175
      %v1184 = vrcp.pop %v1176
      %v1185 = vrcp.pop %v1177
      %v1186 = vrcp.pop %v1178
      %v1187 = vrcp.pop %v1179
      %v1188 = vrcp.pop %v1180
      %v1189 = vrcp.pop %v1181
      %v1190 = vmul.f32 %v1142, %v1182
      %v1191 = vmul.f32 %v1143, %v1183
      %v1192 = vmul.f32 %v1144, %v1184
      %v1193 = vmul.f32 %v1145, %v1185
      %v1194 = vmul.f32 %v1146, %v1186
      %v1195 = vmul.f32 %v1147, %v1187
      %v1196 = vmul.f32 %v1148, %v1188
      %v1197 = vmul.f32 %v1149, %v1189
      %1198 = vst [vmem:[%s259] sm:$0xff] %v1190
      %1199 = vst [vmem:[%s259 + $0x8] sm:$0xff] %v1191
      %1200 = vst [vmem:[%s259 + $0x10] sm:$0xff] %v1192
      %1201 = vst [vmem:[%s259 + $0x18] sm:$0xff] %v1193
      %1202 = vst [vmem:[%s259 + $0x20] sm:$0xff] %v1194
      %1203 = vst [vmem:[%s259 + $0x28] sm:$0xff] %v1195
      %1204 = vst [vmem:[%s259 + $0x30] sm:$0xff] %v1196
      %1205 = vst [vmem:[%s259 + $0x38] sm:$0xff] %v1197
      %s1206 = smul.u32 2, %s20
      %p1207 = scmp.lt.s32.totalorder %s19, 1
      %s1208 = scalar_select %p1207, %s19, 1
      %p1209 = scmp.lt.s32.totalorder %s1206, 1
      %s1210 = scalar_select %p1209, %s1206, 1
      %s1211 = smul.addr %s1208, 8
      %s1212 = sadd.s32 %s1210, %s1211
      %s1213 = smul.addr %s1212, 8
      %s1214 = scalar_lea.vmem %s4, %s1213
      // Predicated region
      $region37: #{block_forward.3} parent=35 // pred_check
        %p1215 = pneg %p146
      $region38: #{block_forward.3} parent=35 // pred_check_branch
        %1217 = sbr.rel (%p1215) target = $region40
      $region39: #{block_forward.3} parent=35 // pred_region
        %s1218 = smul.u32 2, %s20
      $region40: #{block_forward.3} parent=35 // pred_fallthru
        _
    $region36: #{block_forward.3} parent=5 // pred_fallthru
      _
    %p1219 = scmp.le.s32.totalorder 2, %s10
    // Predicated region
    $region41: #{block_forward.3} parent=5 // pred_check
      %p1220 = pneg %p1219
    $region42: #{block_forward.3} parent=5 // pred_check_branch
      %1222 = sbr.rel (%p1220) target = $region44
    $region43: #{block_forward.3} parent=5 // pred_region
      %s1223 = ssub.s32 %s10, 2
      // Predicated region
      $region45: #{block_forward.3} parent=43 // pred_check
        %p1224 = pneg %p152
      $region46: #{block_forward.3} parent=43 // pred_check_branch
        %1226 = sbr.rel (%p1224) target = $region48
      $region47: #{block_forward.3} parent=43 // pred_region
        %s1227 = smul.u32 2, %s22
        %p1228 = scmp.lt.s32.totalorder %s21, 1
        %s1229 = scalar_select %p1228, %s21, 1
        %p1230 = scmp.lt.s32.totalorder %s1227, 1
        %s1231 = scalar_select %p1230, %s1227, 1
        %s1232 = smul.addr %s1229, 8
        %s1233 = sadd.s32 %s1231, %s1232
        %s1234 = smul.addr %s1233, 8
        %s1235 = scalar_lea.vmem %s4, %s1234
      $region48: #{block_forward.3} parent=43 // pred_fallthru
        _
    $region44: #{block_forward.3} parent=5 // pred_fallthru
      _
  $region6: #{block_forward.3} parent=0 // loop_footer
    %s14 = sadd.s32 1, %s10
  $region7: #{block_forward.3} parent=0 // loop_footer_branch
    %9 = sbr.rel target = $region3
  $region8: #{block_forward.3} parent=0 // loop_exit
    _

// kernel: block_forward.2
$region0: #{block_forward.2}
  #allocation0 [shape = 'u32[]', space=smem, size = 0x4, offset = 0x4, fixed_abs, tag = 'smem constant byte address 0x4 - core index']
  #allocation1 [shape = 'u32[72,128]{1,0:T(1,128)}', space=vmem, size = 0x9000, scoped, tag = 'internal scratch']
  #allocation2 [shape = 'f32[32,256]{1,0:T(8,128)}', space=vmem, size = 0x8000, scoped, tag = 'scratch operand']
  #allocation3 [shape = 'f32[32,256]{1,0:T(8,128)}', space=vmem, size = 0x8000, scoped, tag = 'scratch operand']
  %s0 = inlined_call_operand.vmem [shape: bf16[2,4,290], index: 0, kind: input, shape index: {}]
  %s1 = inlined_call_operand.vmem [shape: bf16[9,32,4], index: 1, kind: input, shape index: {}]
  %s2 = inlined_call_operand.vmem [shape: f32[32,1], index: 2, kind: input, shape index: {}]
  %s3 = inlined_call_operand.vmem [shape: f32[2,32,2], index: 3, kind: output, shape index: {}]
  %s4 = sld [smem:[#allocation0]]
  $region53: #{block_forward.2} parent=0
    _
  %s6 = ssub.s32 1, %s4
  %s7 = scalar_select 0, %s6, %s4
  loop: start=0, step=1, limit=4
  $region2: #{block_forward.2} parent=0 // loop_pre_header
    _
  $region3: #{block_forward.2} parent=0 // loop_header
    %s9 = sphi 0, %s13
    %p10 = scmp.ge.s32.totalorder %s9, 4
    %s16 = sphi 0, %s28
    %s17 = sphi 0, %s24
    %s18 = sphi 0, %s16
    %s19 = sphi 0, %s17
    %s20 = sphi 0, %s18
    %s21 = sphi 0, %s19
    %s31 = sphi 0, %s33
    %s34 = sphi 0, %s31
    %s35 = sphi 0, %s34
    %s51 = sphi 0, %s35
    %s55 = sphi 0, %s55
    %s57 = sphi 0, %s55
    %s58 = sphi 0, %s57
    %s72 = sphi 0, %s58
    %s76 = sphi 0, %s76
    %s78 = sphi 0, %s76
    %s79 = sphi 0, %s78
    %s93 = sphi 0, %s79
    %s99 = sphi 0, %s101
    %s102 = sphi 0, %s99
    %s103 = sphi 0, %s102
    %s119 = sphi 0, %s103
  $region4: #{block_forward.2} parent=0 // loop_header_branch
    %12 = sbr.rel (%p10) target = $region8
  $region5: #{block_forward.2} parent=0 // loop_body
    %s14 = ssub.s32 %s9, 1
    %s15 = ssub.s32 %s9, 2
    %s22 = sadd.s32 1, %s17
    %p23 = scmp.ge.s32.totalorder %s22, 1
    %s24 = scalar_select %p23, 0, %s22
    %s25 = sadd.s32 1, %s16
    %s26 = scalar_select %p23, %s25, %s16
    %p27 = scmp.ge.s32.totalorder %s26, 2
    %s28 = scalar_select %p27, 0, %s26
    %s29 = ssub.s32 %s16, %s28
    %p30 = scmp.eq.s32.totalorder %s29, 0
    %s32 = sadd.s32 %s31, 1
    %s33 = scalar_select %p30, %s31, %s32
    %p36 = pneg %p30
    %p37 = scmp.eq.s32.totalorder %s9, 1
    %p38 = por %p36, %p37
    %p39 = scmp.ne.s32.totalorder %s31, %s34
    %p40 = scmp.eq.s32.totalorder %s9, 0
    %p41 = por %p39, %p40
    %p42 = scmp.ne.s32.totalorder %s31, %s34
    %p43 = scmp.eq.s32.totalorder %s14, 1
    %p44 = por %p42, %p43
    %p45 = scmp.ne.s32.totalorder %s34, %s35
    %p46 = scmp.eq.s32.totalorder %s14, 0
    %p47 = por %p45, %p46
    %p48 = scmp.ne.s32.totalorder %s34, %s35
    %p49 = scmp.eq.s32.totalorder %s15, 1
    %p50 = por %p48, %p49
    %p52 = scmp.ne.s32.totalorder %s35, %s51
    %p53 = scmp.eq.s32.totalorder %s15, 0
    %p54 = por %p52, %p53
    %s56 = sadd.s32 %s55, 1
    %p59 = scmp.eq.s32.totalorder %s9, 1
    %p60 = scmp.ne.s32.totalorder %s55, %s57
    %p61 = scmp.eq.s32.totalorder %s9, 0
    %p62 = por %p60, %p61
    %p63 = scmp.ne.s32.totalorder %s55, %s57
    %p64 = scmp.eq.s32.totalorder %s14, 1
    %p65 = por %p63, %p64
    %p66 = scmp.ne.s32.totalorder %s57, %s58
    %p67 = scmp.eq.s32.totalorder %s14, 0
    %p68 = por %p66, %p67
    %p69 = scmp.ne.s32.totalorder %s57, %s58
    %p70 = scmp.eq.s32.totalorder %s15, 1
    %p71 = por %p69, %p70
    %p73 = scmp.ne.s32.totalorder %s58, %s72
    %p74 = scmp.eq.s32.totalorder %s15, 0
    %p75 = por %p73, %p74
    %s77 = sadd.s32 %s76, 1
    %p80 = scmp.eq.s32.totalorder %s9, 1
    %p81 = scmp.ne.s32.totalorder %s76, %s78
    %p82 = scmp.eq.s32.totalorder %s9, 0
    %p83 = por %p81, %p82
    %p84 = scmp.ne.s32.totalorder %s76, %s78
    %p85 = scmp.eq.s32.totalorder %s14, 1
    %p86 = por %p84, %p85
    %p87 = scmp.ne.s32.totalorder %s78, %s79
    %p88 = scmp.eq.s32.totalorder %s14, 0
    %p89 = por %p87, %p88
    %p90 = scmp.ne.s32.totalorder %s78, %s79
    %p91 = scmp.eq.s32.totalorder %s15, 1
    %p92 = por %p90, %p91
    %p94 = scmp.ne.s32.totalorder %s79, %s93
    %p95 = scmp.eq.s32.totalorder %s15, 0
    %p96 = por %p94, %p95
    %s97 = ssub.s32 %s16, %s28
    %p98 = scmp.eq.s32.totalorder %s97, 0
    %s100 = sadd.s32 %s99, 1
    %s101 = scalar_select %p98, %s99, %s100
    %p104 = pneg %p98
    %p105 = scmp.eq.s32.totalorder %s9, 1
    %p106 = por %p104, %p105
    %p107 = scmp.ne.s32.totalorder %s99, %s102
    %p108 = scmp.eq.s32.totalorder %s9, 0
    %p109 = por %p107, %p108
    %p110 = scmp.ne.s32.totalorder %s99, %s102
    %p111 = scmp.eq.s32.totalorder %s14, 1
    %p112 = por %p110, %p111
    %p113 = scmp.ne.s32.totalorder %s102, %s103
    %p114 = scmp.eq.s32.totalorder %s14, 0
    %p115 = por %p113, %p114
    %p116 = scmp.ne.s32.totalorder %s102, %s103
    %p117 = scmp.eq.s32.totalorder %s15, 1
    %p118 = por %p116, %p117
    %p120 = scmp.ne.s32.totalorder %s103, %s119
    %p121 = scmp.eq.s32.totalorder %s15, 0
    %p122 = por %p120, %p121
    %p123 = scmp.le.s32.totalorder 1, %s9
    %p124 = scmp.lt.s32.totalorder %s9, 3
    %p125 = pnand %p123, %p124
    %p126 = pneg %p125
    // Predicated region
    $region9: #{block_forward.2} parent=5 // pred_check
      _
    $region10: #{block_forward.2} parent=5 // pred_check_branch
      %128 = sbr.rel (%p125) target = $region12
    $region11: #{block_forward.2} parent=5 // pred_region
      %s129 = ssub.s32 %s9, 1
      // Predicated region
      $region13: #{block_forward.2} parent=11 // pred_check
        %p130 = pneg %p68
      $region14: #{block_forward.2} parent=11 // pred_check_branch
        %132 = sbr.rel (%p130) target = $region16
      $region15: #{block_forward.2} parent=11 // pred_region
        _
      $region16: #{block_forward.2} parent=11 // pred_fallthru
        _
      // Predicated region
      $region17: #{block_forward.2} parent=11 // pred_check
        %p133 = pneg %p89
      $region18: #{block_forward.2} parent=11 // pred_check_branch
        %135 = sbr.rel (%p133) target = $region20
      $region19: #{block_forward.2} parent=11 // pred_region
        _
      $region20: #{block_forward.2} parent=11 // pred_fallthru
        _
    $region12: #{block_forward.2} parent=5 // pred_fallthru
      _
    %p136 = scmp.lt.s32.totalorder %s9, 2
    // Predicated region
    $region21: #{block_forward.2} parent=5 // pred_check
      %p137 = pneg %p136
    $region22: #{block_forward.2} parent=5 // pred_check_branch
      %139 = sbr.rel (%p137) target = $region24
    $region23: #{block_forward.2} parent=5 // pred_region
      // Predicated region
      $region25: #{block_forward.2} parent=23 // pred_check
        %p140 = pneg %p41
      $region26: #{block_forward.2} parent=23 // pred_check_branch
        %142 = sbr.rel (%p140) target = $region28
      $region27: #{block_forward.2} parent=23 // pred_region
        %p143 = scmp.lt.s32.totalorder %s16, 1
        %s144 = scalar_select %p143, %s16, 1
        %s145 = smul.addr %s144, 3
        %s146 = smul.addr %s145, 2
        %s147 = scalar_lea.vmem %s0, %s146
      $region28: #{block_forward.2} parent=23 // pred_fallthru
        _
    $region24: #{block_forward.2} parent=5 // pred_fallthru
      _
    %p148 = scmp.le.s32.totalorder 1, %s9
    %p149 = scmp.lt.s32.totalorder %s9, 3
    %p150 = pnand %p148, %p149
    %p151 = pneg %p150
    // Predicated region
    $region29: #{block_forward.2} parent=5 // pred_check
      _
    $region30: #{block_forward.2} parent=5 // pred_check_branch
      %153 = sbr.rel (%p150) target = $region32
    $region31: #{block_forward.2} parent=5 // pred_region
      %s154 = ssub.s32 %s9, 1
      %p155 = scmp.lt.s32.totalorder %s18, 1
      %s156 = scalar_select %p155, %s18, 1
      %s157 = smul.addr %s156, 3
      %s158 = smul.addr %s157, 2
      %s159 = scalar_lea.vmem %s0, %s158
      %p160 = pneg %p47
      %p161 = pneg %p44
      %p162 = pneg %p68
      %p163 = pneg %p65
      %p164 = pneg %p89
      %p165 = pneg %p86
      %p166 = pneg %p115
      %p167 = pneg %p112
      %p168 = scmp.lt.s32.totalorder %s18, 1
      %s169 = scalar_select %p168, %s18, 1
      %s170 = smul.addr %s169, 4
      %s171 = smul.addr %s170, 8
      %s172 = scalar_lea.vmem %s3, %s171
      %p173 = scmp.lt.s32.totalorder %s18, 1
      %s174 = scalar_select %p173, %s18, 1
      %s175 = smul.addr %s174, 3
      %s176 = smul.addr %s175, 2
      %s177 = scalar_lea.vmem %s0, %s176
      %p178 = scmp.lt.s32.totalorder %s18, 1
      %s179 = scalar_select %p178, %s18, 1
      %s180 = smul.addr %s179, 4
      %s181 = smul.addr %s180, 8
      %s182 = scalar_lea.vmem %s3, %s181
      %p184 = scmp.eq.s32.totalorder %s19, 0
      // Predicated region
      $region33: #{block_forward.2} parent=31 // pred_check
        %p185 = pneg %p184
      $region34: #{block_forward.2} parent=31 // pred_check_branch
        %187 = sbr.rel (%p185) target = $region36
      $region35: #{block_forward.2} parent=31 // pred_region
        %188 = vst [vmem:[#allocation2] sm:$0xff] 0.0
        %189 = vst [vmem:[#allocation2 + $0x8] sm:$0xff] 0.0
        %190 = vst [vmem:[#allocation2 + $0x10] sm:$0xff] 0.0
        %191 = vst [vmem:[#allocation2 + $0x18] sm:$0xff] 0.0
        %192 = vst [vmem:[#allocation2 + $0x20] sm:$0xff] 0.0
        %193 = vst [vmem:[#allocation2 + $0x28] sm:$0xff] 0.0
        %194 = vst [vmem:[#allocation2 + $0x30] sm:$0xff] 0.0
        %195 = vst [vmem:[#allocation2 + $0x38] sm:$0xff] 0.0
        %196 = vst [vmem:[#allocation3] sm:$0xff] 0.0
        %197 = vst [vmem:[#allocation3 + $0x8] sm:$0xff] 0.0
        %198 = vst [vmem:[#allocation3 + $0x10] sm:$0xff] 0.0
        %199 = vst [vmem:[#allocation3 + $0x18] sm:$0xff] 0.0
        %200 = vst [vmem:[#allocation3 + $0x20] sm:$0xff] 0.0
        %201 = vst [vmem:[#allocation3 + $0x28] sm:$0xff] 0.0
        %202 = vst [vmem:[#allocation3 + $0x30] sm:$0xff] 0.0
        %203 = vst [vmem:[#allocation3 + $0x38] sm:$0xff] 0.0
      $region36: #{block_forward.2} parent=31 // pred_fallthru
        _
      %v204 = vlaneseq
      %v205 = vand.u32 %v204, 127
      %v206 = vadd.s32 %v205, 128
      %vm207 = vcmp.lt.s32.totalorder %v205, 0
      %v208 = vsub.s32 0, %v205
      %v209 = vsel %vm207, %v208, %v205
      %v210 = vshrl.u32 %v209, 4
      %v211 = vand.u32 %v209, 15
      %v212 = vsub.s32 0, %v211
      %v213 = vsel %vm207, %v212, %v211
      %vm214 = vcmp.lt.s32.totalorder %v206, 0
      %v215 = vsub.s32 0, %v206
      %v216 = vsel %vm214, %v215, %v206
      %v217 = vshrl.u32 %v216, 4
      %v218 = vand.u32 %v216, 15
      %v219 = vsub.s32 0, %v218
      %v220 = vsel %vm214, %v219, %v218
      %vm221 = vcmp.ne.s32.totalorder %v213, 0
      %vm222 = vcmp.ne.s32.totalorder %v220, 0
      %vm223 = vcmp.lt.s32.totalorder %v213, 0
      %vm224 = vcmp.lt.s32.totalorder %v220, 0
      %vm225 = vmand %vm223, %vm221
      %vm226 = vmand %vm224, %vm222
      %v227 = vadd.s32 %v213, 16
      %v228 = vadd.s32 %v220, 16
      %v229 = vsel %vm225, %v227, %v213
      %v230 = vsel %vm226, %v228, %v220
      %v231 = vld [vmem:[%s177] sm:$0x3f]
      %s232 = scalar_lea.vmem %s1, 16
      %v233 = vld [vmem:[%s232] sm:$0xf]
      %v234 = vld [vmem:[%s232 + $0x4] sm:$0xf]
      %v235 = vld [vmem:[%s232 + $0x8] sm:$0xf]
      %v236 = vld [vmem:[%s232 + $0xc] sm:$0xf]
      %s237 = scalar_lea.vmem %s1, 64
      %v238 = vld [vmem:[%s237] sm:$0xf]
      %v239 = vld [vmem:[%s237 + $0x4] sm:$0xf]
      %v240 = vld [vmem:[%s237 + $0x8] sm:$0xf]
      %v241 = vld [vmem:[%s237 + $0xc] sm:$0xf]
      %v246 = vunpack.c.l.b16 %v238
      %v247 = vunpack.c.l.b16 %v239
      %v248 = vunpack.c.l.b16 %v240
      %v249 = vunpack.c.l.b16 %v241
      %v250 = vpack.c.b16 %v247, %v246
      %v251 = vpack.c.b16 %v249, %v248
      %253 = vst [vmem:[#allocation1] ss:$4 sm:$0xff] %v231
      %v254 = vld.sshfl [vmem:[#allocation1] sm:$0xff pattern:$0x73625140]
      %v256 = vld.sshfl [vmem:[#allocation1 + $0x8] sm:$0xff pattern:$0x73625140]
      %v258 = vld.sshfl [vmem:[#allocation1 + $0x10] sm:$0xff pattern:$0x73625140]
      %260 = vrot.lane.b32.xlu0 %v254, 111
      %v261 = vpop.permute.xlu0 %260
      %262 = vrot.lane.b32.xlu0 %v256, 111
      %v263 = vpop.permute.xlu0 %262
      %264 = vrot.lane.b32.xlu0 %v258, 111
      %v265 = vpop.permute.xlu0 %264
      %vm266 = vcmask 908288
      %v267 = vsel %vm266, %v261, %v263
      %v268 = vsel %vm266, %v263, %v265
      %vm269 = vcmask 31744
      %v271 = vsel %vm269, %v250, 0
      %v274 = vsel %vm269, %v251, 0
      %vm276 = vcmask 1041408
      %v278 = vsel %vm276, %v267, 0
      %v281 = vsel %vm276, %v268, 0
      %283 = vmatpush.bf16.msra.mxu0 0
      %284 = vmatpush.bf16.msra.mxu0 0
      %285 = vmatpush.bf16.msra.mxu0 0
      %286 = vmatpush.bf16.msra.mxu0 0
      %287 = vmatpush.bf16.msra.mxu0 0
      %288 = vmatpush.bf16.msra.mxu0 0
      %289 = vmatpush.bf16.msra.mxu0 0
      %290 = vmatpush.bf16.msra.mxu0 %v278
      %291 = vmatmul.bf16.gmra.mxu0 %v271
      %v292 = vpop.f32.mrf.mxu0
      %v293 = vadd.f32 0.0, %v292
      %v294 = vpop.f32.mrf.mxu0
      %v295 = vadd.f32 0.0, %v294
      %296 = vmatmul.bf16.gmra.mxu0 %v274
      %v297 = vpop.f32.mrf.mxu0
      %v298 = vadd.f32 0.0, %v297
      %v299 = vpop.f32.mrf.mxu0
      %v300 = vadd.f32 0.0, %v299
      %301 = vdwg.mxu0
      %302 = vmatpush.bf16.msra.mxu0 0
      %303 = vmatpush.bf16.msra.mxu0 0
      %304 = vmatpush.bf16.msra.mxu0 0
      %305 = vmatpush.bf16.msra.mxu0 0
      %306 = vmatpush.bf16.msra.mxu0 0
      %307 = vmatpush.bf16.msra.mxu0 0
      %308 = vmatpush.bf16.msra.mxu0 0
      %309 = vmatpush.bf16.msra.mxu0 %v281
      %310 = vmatmul.bf16.gmra.mxu0 %v271
      %v311 = vpop.f32.mrf.mxu0
      %v312 = vadd.f32 0.0, %v311
      %v313 = vpop.f32.mrf.mxu0
      %v314 = vadd.f32 0.0, %v313
      %315 = vmatmul.bf16.gmra.mxu0 %v274
      %v316 = vpop.f32.mrf.mxu0
      %v317 = vadd.f32 0.0, %v316
      %v318 = vpop.f32.mrf.mxu0
      %v319 = vadd.f32 0.0, %v318
      %320 = vdwg.mxu0
      %v325 = vunpack.c.l.b16 %v233
      %v326 = vunpack.c.l.b16 %v234
      %v327 = vunpack.c.l.b16 %v235
      %v328 = vunpack.c.l.b16 %v236
      %v329 = vpack.c.b16 %v326, %v325
      %v330 = vpack.c.b16 %v328, %v327
      %331 = vst [vmem:[#allocation1] ss:$4 sm:$0xff] %v231
      %v332 = vld.sshfl [vmem:[#allocation1] sm:$0xff pattern:$0x73625140]
      %v334 = vld.sshfl [vmem:[#allocation1 + $0x8] sm:$0xff pattern:$0x73625140]
      %v336 = vld.sshfl [vmem:[#allocation1 + $0x10] sm:$0xff pattern:$0x73625140]
      %338 = vrot.lane.b32.xlu0 %v332, 127
      %v339 = vpop.permute.xlu0 %338
      %340 = vrot.lane.b32.xlu0 %v334, 127
      %v341 = vpop.permute.xlu0 %340
      %342 = vrot.lane.b32.xlu0 %v336, 127
      %v343 = vpop.permute.xlu0 %342
      %vm344 = vcmask 1039360
      %v345 = vsel %vm344, %v339, %v341
      %v346 = vsel %vm344, %v341, %v343
      %v348 = vsel %vm269, %v329, 0
      %v351 = vsel %vm269, %v330, 0
      %v354 = vsel %vm276, %v345, 0
      %v357 = vsel %vm276, %v346, 0
      %359 = vmatpush.bf16.msra.mxu0 0
      %360 = vmatpush.bf16.msra.mxu0 0
      %361 = vmatpush.bf16.msra.mxu0 0
      %362 = vmatpush.bf16.msra.mxu0 0
      %363 = vmatpush.bf16.msra.mxu0 0
      %364 = vmatpush.bf16.msra.mxu0 0
      %365 = vmatpush.bf16.msra.mxu0 0
      %366 = vmatpush.bf16.msra.mxu0 %v354
      %367 = vmatmul.bf16.gmra.mxu0 %v348
      %v368 = vpop.f32.mrf.mxu0
      %v369 = vadd.f32 %v293, %v368
      %v370 = vpop.f32.mrf.mxu0
      %v371 = vadd.f32 %v295, %v370
      %372 = vmatmul.bf16.gmra.mxu0 %v351
      %v373 = vpop.f32.mrf.mxu0
      %v374 = vadd.f32 %v298, %v373
      %v375 = vpop.f32.mrf.mxu0
      %v376 = vadd.f32 %v300, %v375
      %377 = vdwg.mxu0
      %378 = vmatpush.bf16.msra.mxu0 0
      %379 = vmatpush.bf16.msra.mxu0 0
      %380 = vmatpush.bf16.msra.mxu0 0
      %381 = vmatpush.bf16.msra.mxu0 0
      %382 = vmatpush.bf16.msra.mxu0 0
      %383 = vmatpush.bf16.msra.mxu0 0
      %384 = vmatpush.bf16.msra.mxu0 0
      %385 = vmatpush.bf16.msra.mxu0 %v357
      %386 = vmatmul.bf16.gmra.mxu0 %v348
      %v387 = vpop.f32.mrf.mxu0
      %v388 = vadd.f32 %v312, %v387
      %v389 = vpop.f32.mrf.mxu0
      %v390 = vadd.f32 %v314, %v389
      %391 = vmatmul.bf16.gmra.mxu0 %v351
      %v392 = vpop.f32.mrf.mxu0
      %v393 = vadd.f32 %v317, %v392
      %v394 = vpop.f32.mrf.mxu0
      %v395 = vadd.f32 %v319, %v394
      %396 = vdwg.mxu0
      %v397 = vld [vmem:[%s177] sm:$0x3f]
      %s398 = scalar_lea.vmem %s1, 112
      %v399 = vld [vmem:[%s398] sm:$0xf]
      %v400 = vld [vmem:[%s398 + $0x4] sm:$0xf]
      %v401 = vld [vmem:[%s398 + $0x8] sm:$0xf]
      %v402 = vld [vmem:[%s398 + $0xc] sm:$0xf]
      %v407 = vunpack.c.l.b16 %v399
      %v408 = vunpack.c.l.b16 %v400
      %v409 = vunpack.c.l.b16 %v401
      %v410 = vunpack.c.l.b16 %v402
      %v411 = vpack.c.b16 %v408, %v407
      %v412 = vpack.c.b16 %v410, %v409
      %414 = vst [vmem:[#allocation1] ss:$4 sm:$0xff] %v397
      %v415 = vld.sshfl [vmem:[#allocation1] sm:$0xff pattern:$0x73625140]
      %v417 = vld.sshfl [vmem:[#allocation1 + $0x8] sm:$0xff pattern:$0x73625140]
      %v419 = vld.sshfl [vmem:[#allocation1 + $0x10] sm:$0xff pattern:$0x73625140]
      %421 = vrot.lane.b32.xlu0 %v415, 95
      %v422 = vpop.permute.xlu0 %421
      %423 = vrot.lane.b32.xlu0 %v417, 95
      %v424 = vpop.permute.xlu0 %423
      %425 = vrot.lane.b32.xlu0 %v419, 95
      %v426 = vpop.permute.xlu0 %425
      %vm427 = vcmask 777216
      %v428 = vsel %vm427, %v422, %v424
      %v429 = vsel %vm427, %v424, %v426
      %v431 = vsel %vm269, %v411, 0
      %v434 = vsel %vm269, %v412, 0
      %v437 = vsel %vm276, %v428, 0
      %v440 = vsel %vm276, %v429, 0
      %442 = vmatpush.bf16.msra.mxu0 0
      %443 = vmatpush.bf16.msra.mxu0 0
      %444 = vmatpush.bf16.msra.mxu0 0
      %445 = vmatpush.bf16.msra.mxu0 0
      %446 = vmatpush.bf16.msra.mxu0 0
      %447 = vmatpush.bf16.msra.mxu0 0
      %448 = vmatpush.bf16.msra.mxu0 0
      %449 = vmatpush.bf16.msra.mxu0 %v437
      %450 = vmatmul.bf16.gmra.mxu0 %v431
      %v451 = vpop.f32.mrf.mxu0
      %v452 = vadd.f32 0.0, %v451
      %v453 = vpop.f32.mrf.mxu0
      %v454 = vadd.f32 0.0, %v453
      %455 = vmatmul.bf16.gmra.mxu0 %v434
      %v456 = vpop.f32.mrf.mxu0
      %v457 = vadd.f32 0.0, %v456
      %v458 = vpop.f32.mrf.mxu0
      %v459 = vadd.f32 0.0, %v458
      %460 = vdwg.mxu0
      %461 = vmatpush.bf16.msra.mxu0 0
      %462 = vmatpush.bf16.msra.mxu0 0
      %463 = vmatpush.bf16.msra.mxu0 0
      %464 = vmatpush.bf16.msra.mxu0 0
      %465 = vmatpush.bf16.msra.mxu0 0
      %466 = vmatpush.bf16.msra.mxu0 0
      %467 = vmatpush.bf16.msra.mxu0 0
      %468 = vmatpush.bf16.msra.mxu0 %v440
      %469 = vmatmul.bf16.gmra.mxu0 %v431
      %v470 = vpop.f32.mrf.mxu0
      %v471 = vadd.f32 0.0, %v470
      %v472 = vpop.f32.mrf.mxu0
      %v473 = vadd.f32 0.0, %v472
      %474 = vmatmul.bf16.gmra.mxu0 %v434
      %v475 = vpop.f32.mrf.mxu0
      %v476 = vadd.f32 0.0, %v475
      %v477 = vpop.f32.mrf.mxu0
      %v478 = vadd.f32 0.0, %v477
      %479 = vdwg.mxu0
      %v480 = vadd.f32 %v369, %v452
      %v481 = vadd.f32 %v388, %v471
      %v482 = vadd.f32 %v371, %v454
      %v483 = vadd.f32 %v390, %v473
      %v484 = vadd.f32 %v374, %v457
      %v485 = vadd.f32 %v393, %v476
      %v486 = vadd.f32 %v376, %v459
      %v487 = vadd.f32 %v395, %v478
      %vm488 = vcmp.ne.s32.totalorder %v229, 0
      %vm489 = vcmp.ne.s32.totalorder %v230, 0
      %v490 = vld [vmem:[%s177] sm:$0xf]
      %v491 = vld [vmem:[%s1] sm:$0xf]
      %v492 = vld [vmem:[%s1 + $0x4] sm:$0xf]
      %v493 = vld [vmem:[%s1 + $0x8] sm:$0xf]
      %v494 = vld [vmem:[%s1 + $0xc] sm:$0xf]
      %v495 = vld [vmem:[%s177] sm:$0x3f]
      %s496 = scalar_lea.vmem %s1, 48
      %v497 = vld [vmem:[%s496] sm:$0xf]
      %v498 = vld [vmem:[%s496 + $0x4] sm:$0xf]
      %v499 = vld [vmem:[%s496 + $0x8] sm:$0xf]
      %v500 = vld [vmem:[%s496 + $0xc] sm:$0xf]
      %v505 = vunpack.c.l.b16 %v497
      %v506 = vunpack.c.l.b16 %v498
      %v507 = vunpack.c.l.b16 %v499
      %v508 = vunpack.c.l.b16 %v500
      %v509 = vpack.c.b16 %v506, %v505
      %v510 = vpack.c.b16 %v508, %v507
      %512 = vst [vmem:[#allocation1] ss:$4 sm:$0xff] %v495
      %v513 = vld.sshfl [vmem:[#allocation1] sm:$0xff pattern:$0x73625140]
      %v515 = vld.sshfl [vmem:[#allocation1 + $0x8] sm:$0xff pattern:$0x73625140]
      %v517 = vld.sshfl [vmem:[#allocation1 + $0x10] sm:$0xff pattern:$0x73625140]
      %519 = vrot.lane.b32.xlu0 %v513, 112
      %v520 = vpop.permute.xlu0 %519
      %521 = vrot.lane.b32.xlu0 %v515, 112
      %v522 = vpop.permute.xlu0 %521
      %523 = vrot.lane.b32.xlu0 %v517, 112
      %v524 = vpop.permute.xlu0 %523
      %vm525 = vcmask 916480
      %v526 = vsel %vm525, %v520, %v522
      %v527 = vsel %vm525, %v522, %v524
      %v529 = vsel %vm269, %v509, 0
      %v532 = vsel %vm269, %v510, 0
      %v535 = vsel %vm276, %v526, 0
      %v538 = vsel %vm276, %v527, 0
      %540 = vmatpush.bf16.msra.mxu0 0
      %541 = vmatpush.bf16.msra.mxu0 0
      %542 = vmatpush.bf16.msra.mxu0 0
      %543 = vmatpush.bf16.msra.mxu0 0
      %544 = vmatpush.bf16.msra.mxu0 0
      %545 = vmatpush.bf16.msra.mxu0 0
      %546 = vmatpush.bf16.msra.mxu0 0
      %547 = vmatpush.bf16.msra.mxu0 %v535
      %548 = vmatmul.bf16.gmra.mxu0 %v529
      %v549 = vpop.f32.mrf.mxu0
      %v550 = vadd.f32 0.0, %v549
      %v551 = vpop.f32.mrf.mxu0
      %v552 = vadd.f32 0.0, %v551
      %553 = vmatmul.bf16.gmra.mxu0 %v532
      %v554 = vpop.f32.mrf.mxu0
      %v555 = vadd.f32 0.0, %v554
      %v556 = vpop.f32.mrf.mxu0
      %v557 = vadd.f32 0.0, %v556
      %558 = vdwg.mxu0
      %559 = vmatpush.bf16.msra.mxu0 0
      %560 = vmatpush.bf16.msra.mxu0 0
      %561 = vmatpush.bf16.msra.mxu0 0
      %562 = vmatpush.bf16.msra.mxu0 0
      %563 = vmatpush.bf16.msra.mxu0 0
      %564 = vmatpush.bf16.msra.mxu0 0
      %565 = vmatpush.bf16.msra.mxu0 0
      %566 = vmatpush.bf16.msra.mxu0 %v538
      %567 = vmatmul.bf16.gmra.mxu0 %v529
      %v568 = vpop.f32.mrf.mxu0
      %v569 = vadd.f32 0.0, %v568
      %v570 = vpop.f32.mrf.mxu0
      %v571 = vadd.f32 0.0, %v570
      %572 = vmatmul.bf16.gmra.mxu0 %v532
      %v573 = vpop.f32.mrf.mxu0
      %v574 = vadd.f32 0.0, %v573
      %v575 = vpop.f32.mrf.mxu0
      %v576 = vadd.f32 0.0, %v575
      %577 = vdwg.mxu0
      %v582 = vunpack.c.l.b16 %v491
      %v583 = vunpack.c.l.b16 %v492
      %v584 = vunpack.c.l.b16 %v493
      %v585 = vunpack.c.l.b16 %v494
      %v586 = vpack.c.b16 %v583, %v582
      %v587 = vpack.c.b16 %v585, %v584
      %589 = vst [vmem:[#allocation1] ss:$4 sm:$0xff] %v490
      %v590 = vld.sshfl [vmem:[#allocation1] sm:$0xff pattern:$0x73625140]
      %v591 = vld.sshfl [vmem:[#allocation1 + $0x8] sm:$0xff pattern:$0x73625140]
      %v593 = vsel %vm269, %v586, 0
      %v596 = vsel %vm269, %v587, 0
      %v598 = vsel %vm276, %v590, 0
      %v600 = vsel %vm276, %v591, 0
      %602 = vmatpush.bf16.msra.mxu0 0
      %603 = vmatpush.bf16.msra.mxu0 0
      %604 = vmatpush.bf16.msra.mxu0 0
      %605 = vmatpush.bf16.msra.mxu0 0
      %606 = vmatpush.bf16.msra.mxu0 0
      %607 = vmatpush.bf16.msra.mxu0 0
      %608 = vmatpush.bf16.msra.mxu0 0
      %609 = vmatpush.bf16.msra.mxu0 %v598
      %610 = vmatmul.bf16.gmra.mxu0 %v593
      %v611 = vpop.f32.mrf.mxu0
      %v612 = vadd.f32 %v550, %v611
      %v613 = vpop.f32.mrf.mxu0
      %v614 = vadd.f32 %v552, %v613
      %615 = vmatmul.bf16.gmra.mxu0 %v596
      %v616 = vpop.f32.mrf.mxu0
      %v617 = vadd.f32 %v555, %v616
      %v618 = vpop.f32.mrf.mxu0
      %v619 = vadd.f32 %v557, %v618
      %620 = vdwg.mxu0
      %621 = vmatpush.bf16.msra.mxu0 0
      %622 = vmatpush.bf16.msra.mxu0 0
      %623 = vmatpush.bf16.msra.mxu0 0
      %624 = vmatpush.bf16.msra.mxu0 0
      %625 = vmatpush.bf16.msra.mxu0 0
      %626 = vmatpush.bf16.msra.mxu0 0
      %627 = vmatpush.bf16.msra.mxu0 0
      %628 = vmatpush.bf16.msra.mxu0 %v600
      %629 = vmatmul.bf16.gmra.mxu0 %v593
      %v630 = vpop.f32.mrf.mxu0
      %v631 = vadd.f32 %v569, %v630
      %v632 = vpop.f32.mrf.mxu0
      %v633 = vadd.f32 %v571, %v632
      %634 = vmatmul.bf16.gmra.mxu0 %v596
      %v635 = vpop.f32.mrf.mxu0
      %v636 = vadd.f32 %v574, %v635
      %v637 = vpop.f32.mrf.mxu0
      %v638 = vadd.f32 %v576, %v637
      %639 = vdwg.mxu0
      %v640 = vld [vmem:[%s177] sm:$0x3f]
      %s641 = scalar_lea.vmem %s1, 96
      %v642 = vld [vmem:[%s641] sm:$0xf]
      %v643 = vld [vmem:[%s641 + $0x4] sm:$0xf]
      %v644 = vld [vmem:[%s641 + $0x8] sm:$0xf]
      %v645 = vld [vmem:[%s641 + $0xc] sm:$0xf]
      %v650 = vunpack.c.l.b16 %v642
      %v651 = vunpack.c.l.b16 %v643
      %v652 = vunpack.c.l.b16 %v644
      %v653 = vunpack.c.l.b16 %v645
      %v654 = vpack.c.b16 %v651, %v650
      %v655 = vpack.c.b16 %v653, %v652
      %657 = vst [vmem:[#allocation1] ss:$4 sm:$0xff] %v640
      %v658 = vld.sshfl [vmem:[#allocation1] sm:$0xff pattern:$0x73625140]
      %v660 = vld.sshfl [vmem:[#allocation1 + $0x8] sm:$0xff pattern:$0x73625140]
      %v662 = vld.sshfl [vmem:[#allocation1 + $0x10] sm:$0xff pattern:$0x73625140]
      %664 = vrot.lane.b32.xlu0 %v658, 96
      %v665 = vpop.permute.xlu0 %664
      %666 = vrot.lane.b32.xlu0 %v660, 96
      %v667 = vpop.permute.xlu0 %666
      %668 = vrot.lane.b32.xlu0 %v662, 96
      %v669 = vpop.permute.xlu0 %668
      %vm670 = vcmask 785408
      %v671 = vsel %vm670, %v665, %v667
      %v672 = vsel %vm670, %v667, %v669
      %v674 = vsel %vm269, %v654, 0
      %v677 = vsel %vm269, %v655, 0
      %v680 = vsel %vm276, %v671, 0
      %v683 = vsel %vm276, %v672, 0
      %685 = vmatpush.bf16.msra.mxu0 0
      %686 = vmatpush.bf16.msra.mxu0 0
      %687 = vmatpush.bf16.msra.mxu0 0
      %688 = vmatpush.bf16.msra.mxu0 0
      %689 = vmatpush.bf16.msra.mxu0 0
      %690 = vmatpush.bf16.msra.mxu0 0
      %691 = vmatpush.bf16.msra.mxu0 0
      %692 = vmatpush.bf16.msra.mxu0 %v680
      %693 = vmatmul.bf16.gmra.mxu0 %v674
      %v694 = vpop.f32.mrf.mxu0
      %v695 = vadd.f32 0.0, %v694
      %v696 = vpop.f32.mrf.mxu0
      %v697 = vadd.f32 0.0, %v696
      %698 = vmatmul.bf16.gmra.mxu0 %v677
      %v699 = vpop.f32.mrf.mxu0
      %v700 = vadd.f32 0.0, %v699
      %v701 = vpop.f32.mrf.mxu0
      %v702 = vadd.f32 0.0, %v701
      %703 = vdwg.mxu0
      %704 = vmatpush.bf16.msra.mxu0 0
      %705 = vmatpush.bf16.msra.mxu0 0
      %706 = vmatpush.bf16.msra.mxu0 0
      %707 = vmatpush.bf16.msra.mxu0 0
      %708 = vmatpush.bf16.msra.mxu0 0
      %709 = vmatpush.bf16.msra.mxu0 0
      %710 = vmatpush.bf16.msra.mxu0 0
      %711 = vmatpush.bf16.msra.mxu0 %v683
      %712 = vmatmul.bf16.gmra.mxu0 %v674
      %v713 = vpop.f32.mrf.mxu0
      %v714 = vadd.f32 0.0, %v713
      %v715 = vpop.f32.mrf.mxu0
      %v716 = vadd.f32 0.0, %v715
      %717 = vmatmul.bf16.gmra.mxu0 %v677
      %v718 = vpop.f32.mrf.mxu0
      %v719 = vadd.f32 0.0, %v718
      %v720 = vpop.f32.mrf.mxu0
      %v721 = vadd.f32 0.0, %v720
      %722 = vdwg.mxu0
      %v723 = vadd.f32 %v612, %v695
      %v724 = vadd.f32 %v631, %v714
      %v725 = vadd.f32 %v614, %v697
      %v726 = vadd.f32 %v633, %v716
      %v727 = vadd.f32 %v617, %v700
      %v728 = vadd.f32 %v636, %v719
      %v729 = vadd.f32 %v619, %v702
      %v730 = vadd.f32 %v638, %v721
      %v731 = vsel %vm488, 1, 0
      %v732 = vsel %vm489, 1, 0
      %vm733 = vcmp.eq.s32.totalorder %v731, 1
      %vm734 = vcmp.eq.s32.totalorder %v732, 1
      %v735 = vsel %vm733, %v723, 0.0
      %v736 = vsel %vm734, %v724, 0.0
      %v737 = vsel %vm733, %v725, 0.0
      %v738 = vsel %vm734, %v726, 0.0
      %v739 = vsel %vm733, %v727, 0.0
      %v740 = vsel %vm734, %v728, 0.0
      %v741 = vsel %vm733, %v729, 0.0
      %v742 = vsel %vm734, %v730, 0.0
      %v743 = vadd.f32 %v480, %v735
      %v744 = vadd.f32 %v481, %v736
      %v745 = vadd.f32 %v482, %v737
      %v746 = vadd.f32 %v483, %v738
      %v747 = vadd.f32 %v484, %v739
      %v748 = vadd.f32 %v485, %v740
      %v749 = vadd.f32 %v486, %v741
      %v750 = vadd.f32 %v487, %v742
      %vm751 = vcmp.ne.s32.totalorder %v229, 15
      %vm752 = vcmp.ne.s32.totalorder %v230, 15
      %v753 = vld [vmem:[%s177] sm:$0x3f]
      %s754 = scalar_lea.vmem %s1, 32
      %v755 = vld [vmem:[%s754] sm:$0xf]
      %v756 = vld [vmem:[%s754 + $0x4] sm:$0xf]
      %v757 = vld [vmem:[%s754 + $0x8] sm:$0xf]
      %v758 = vld [vmem:[%s754 + $0xc] sm:$0xf]
      %s759 = scalar_lea.vmem %s1, 80
      %v760 = vld [vmem:[%s759] sm:$0xf]
      %v761 = vld [vmem:[%s759 + $0x4] sm:$0xf]
      %v762 = vld [vmem:[%s759 + $0x8] sm:$0xf]
      %v763 = vld [vmem:[%s759 + $0xc] sm:$0xf]
      %v768 = vunpack.c.l.b16 %v760
      %v769 = vunpack.c.l.b16 %v761
      %v770 = vunpack.c.l.b16 %v762
      %v771 = vunpack.c.l.b16 %v763
      %v772 = vpack.c.b16 %v769, %v768
      %v773 = vpack.c.b16 %v771, %v770
      %775 = vst [vmem:[#allocation1] ss:$4 sm:$0xff] %v753
      %v776 = vld.sshfl [vmem:[#allocation1] sm:$0xff pattern:$0x73625140]
      %v778 = vld.sshfl [vmem:[#allocation1 + $0x8] sm:$0xff pattern:$0x73625140]
      %v780 = vld.sshfl [vmem:[#allocation1 + $0x10] sm:$0xff pattern:$0x73625140]
      %782 = vrot.lane.b32.xlu0 %v776, 110
      %v783 = vpop.permute.xlu0 %782
      %784 = vrot.lane.b32.xlu0 %v778, 110
      %v785 = vpop.permute.xlu0 %784
      %786 = vrot.lane.b32.xlu0 %v780, 110
      %v787 = vpop.permute.xlu0 %786
      %vm788 = vcmask 900096
      %v789 = vsel %vm788, %v783, %v785
      %v790 = vsel %vm788, %v785, %v787
      %v792 = vsel %vm269, %v772, 0
      %v795 = vsel %vm269, %v773, 0
      %v798 = vsel %vm276, %v789, 0
      %v801 = vsel %vm276, %v790, 0
      %803 = vmatpush.bf16.msra.mxu0 0
      %804 = vmatpush.bf16.msra.mxu0 0
      %805 = vmatpush.bf16.msra.mxu0 0
      %806 = vmatpush.bf16.msra.mxu0 0
      %807 = vmatpush.bf16.msra.mxu0 0
      %808 = vmatpush.bf16.msra.mxu0 0
      %809 = vmatpush.bf16.msra.mxu0 0
      %810 = vmatpush.bf16.msra.mxu0 %v798
      %811 = vmatmul.bf16.gmra.mxu0 %v792
      %v812 = vpop.f32.mrf.mxu0
      %v813 = vadd.f32 0.0, %v812
      %v814 = vpop.f32.mrf.mxu0
      %v815 = vadd.f32 0.0, %v814
      %816 = vmatmul.bf16.gmra.mxu0 %v795
      %v817 = vpop.f32.mrf.mxu0
      %v818 = vadd.f32 0.0, %v817
      %v819 = vpop.f32.mrf.mxu0
      %v820 = vadd.f32 0.0, %v819
      %821 = vdwg.mxu0
      %822 = vmatpush.bf16.msra.mxu0 0
      %823 = vmatpush.bf16.msra.mxu0 0
      %824 = vmatpush.bf16.msra.mxu0 0
      %825 = vmatpush.bf16.msra.mxu0 0
      %826 = vmatpush.bf16.msra.mxu0 0
      %827 = vmatpush.bf16.msra.mxu0 0
      %828 = vmatpush.bf16.msra.mxu0 0
      %829 = vmatpush.bf16.msra.mxu0 %v801
      %830 = vmatmul.bf16.gmra.mxu0 %v792
      %v831 = vpop.f32.mrf.mxu0
      %v832 = vadd.f32 0.0, %v831
      %v833 = vpop.f32.mrf.mxu0
      %v834 = vadd.f32 0.0, %v833
      %835 = vmatmul.bf16.gmra.mxu0 %v795
      %v836 = vpop.f32.mrf.mxu0
      %v837 = vadd.f32 0.0, %v836
      %v838 = vpop.f32.mrf.mxu0
      %v839 = vadd.f32 0.0, %v838
      %840 = vdwg.mxu0
      %v845 = vunpack.c.l.b16 %v755
      %v846 = vunpack.c.l.b16 %v756
      %v847 = vunpack.c.l.b16 %v757
      %v848 = vunpack.c.l.b16 %v758
      %v849 = vpack.c.b16 %v846, %v845
      %v850 = vpack.c.b16 %v848, %v847
      %851 = vst [vmem:[#allocation1] ss:$4 sm:$0xff] %v753
      %v852 = vld.sshfl [vmem:[#allocation1] sm:$0xff pattern:$0x73625140]
      %v854 = vld.sshfl [vmem:[#allocation1 + $0x8] sm:$0xff pattern:$0x73625140]
      %v856 = vld.sshfl [vmem:[#allocation1 + $0x10] sm:$0xff pattern:$0x73625140]
      %858 = vrot.lane.b32.xlu0 %v852, 126
      %v859 = vpop.permute.xlu0 %858
      %860 = vrot.lane.b32.xlu0 %v854, 126
      %v861 = vpop.permute.xlu0 %860
      %862 = vrot.lane.b32.xlu0 %v856, 126
      %v863 = vpop.permute.xlu0 %862
      %vm864 = vcmask 1031168
      %v865 = vsel %vm864, %v859, %v861
      %v866 = vsel %vm864, %v861, %v863
      %v868 = vsel %vm269, %v849, 0
      %v871 = vsel %vm269, %v850, 0
      %v874 = vsel %vm276, %v865, 0
      %v877 = vsel %vm276, %v866, 0
      %879 = vmatpush.bf16.msra.mxu0 0
      %880 = vmatpush.bf16.msra.mxu0 0
      %881 = vmatpush.bf16.msra.mxu0 0
      %882 = vmatpush.bf16.msra.mxu0 0
      %883 = vmatpush.bf16.msra.mxu0 0
      %884 = vmatpush.bf16.msra.mxu0 0
      %885 = vmatpush.bf16.msra.mxu0 0
      %886 = vmatpush.bf16.msra.mxu0 %v874
      %887 = vmatmul.bf16.gmra.mxu0 %v868
      %v888 = vpop.f32.mrf.mxu0
      %v889 = vadd.f32 %v813, %v888
      %v890 = vpop.f32.mrf.mxu0
      %v891 = vadd.f32 %v815, %v890
      %892 = vmatmul.bf16.gmra.mxu0 %v871
      %v893 = vpop.f32.mrf.mxu0
      %v894 = vadd.f32 %v818, %v893
      %v895 = vpop.f32.mrf.mxu0
      %v896 = vadd.f32 %v820, %v895
      %897 = vdwg.mxu0
      %898 = vmatpush.bf16.msra.mxu0 0
      %899 = vmatpush.bf16.msra.mxu0 0
      %900 = vmatpush.bf16.msra.mxu0 0
      %901 = vmatpush.bf16.msra.mxu0 0
      %902 = vmatpush.bf16.msra.mxu0 0
      %903 = vmatpush.bf16.msra.mxu0 0
      %904 = vmatpush.bf16.msra.mxu0 0
      %905 = vmatpush.bf16.msra.mxu0 %v877
      %906 = vmatmul.bf16.gmra.mxu0 %v868
      %v907 = vpop.f32.mrf.mxu0
      %v908 = vadd.f32 %v832, %v907
      %v909 = vpop.f32.mrf.mxu0
      %v910 = vadd.f32 %v834, %v909
      %911 = vmatmul.bf16.gmra.mxu0 %v871
      %v912 = vpop.f32.mrf.mxu0
      %v913 = vadd.f32 %v837, %v912
      %v914 = vpop.f32.mrf.mxu0
      %v915 = vadd.f32 %v839, %v914
      %916 = vdwg.mxu0
      %v917 = vld [vmem:[%s177] sm:$0x3f]
      %s918 = scalar_lea.vmem %s1, 128
      %v919 = vld [vmem:[%s918] sm:$0xf]
      %v920 = vld [vmem:[%s918 + $0x4] sm:$0xf]
      %v921 = vld [vmem:[%s918 + $0x8] sm:$0xf]
      %v922 = vld [vmem:[%s918 + $0xc] sm:$0xf]
      %v927 = vunpack.c.l.b16 %v919
      %v928 = vunpack.c.l.b16 %v920
      %v929 = vunpack.c.l.b16 %v921
      %v930 = vunpack.c.l.b16 %v922
      %v931 = vpack.c.b16 %v928, %v927
      %v932 = vpack.c.b16 %v930, %v929
      %934 = vst [vmem:[#allocation1] ss:$4 sm:$0xff] %v917
      %v935 = vld.sshfl [vmem:[#allocation1] sm:$0xff pattern:$0x73625140]
      %v937 = vld.sshfl [vmem:[#allocation1 + $0x8] sm:$0xff pattern:$0x73625140]
      %v939 = vld.sshfl [vmem:[#allocation1 + $0x10] sm:$0xff pattern:$0x73625140]
      %941 = vrot.lane.b32.xlu0 %v935, 94
      %v942 = vpop.permute.xlu0 %941
      %943 = vrot.lane.b32.xlu0 %v937, 94
      %v944 = vpop.permute.xlu0 %943
      %945 = vrot.lane.b32.xlu0 %v939, 94
      %v946 = vpop.permute.xlu0 %945
      %vm947 = vcmask 769024
      %v948 = vsel %vm947, %v942, %v944
      %v949 = vsel %vm947, %v944, %v946
      %v951 = vsel %vm269, %v931, 0
      %v954 = vsel %vm269, %v932, 0
      %v957 = vsel %vm276, %v948, 0
      %v960 = vsel %vm276, %v949, 0
      %962 = vmatpush.bf16.msra.mxu0 0
      %963 = vmatpush.bf16.msra.mxu0 0
      %964 = vmatpush.bf16.msra.mxu0 0
      %965 = vmatpush.bf16.msra.mxu0 0
      %966 = vmatpush.bf16.msra.mxu0 0
      %967 = vmatpush.bf16.msra.mxu0 0
      %968 = vmatpush.bf16.msra.mxu0 0
      %969 = vmatpush.bf16.msra.mxu0 %v957
      %970 = vmatmul.bf16.gmra.mxu0 %v951
      %v971 = vpop.f32.mrf.mxu0
      %v972 = vadd.f32 0.0, %v971
      %v973 = vpop.f32.mrf.mxu0
      %v974 = vadd.f32 0.0, %v973
      %975 = vmatmul.bf16.gmra.mxu0 %v954
      %v976 = vpop.f32.mrf.mxu0
      %v977 = vadd.f32 0.0, %v976
      %v978 = vpop.f32.mrf.mxu0
      %v979 = vadd.f32 0.0, %v978
      %980 = vdwg.mxu0
      %981 = vmatpush.bf16.msra.mxu0 0
      %982 = vmatpush.bf16.msra.mxu0 0
      %983 = vmatpush.bf16.msra.mxu0 0
      %984 = vmatpush.bf16.msra.mxu0 0
      %985 = vmatpush.bf16.msra.mxu0 0
      %986 = vmatpush.bf16.msra.mxu0 0
      %987 = vmatpush.bf16.msra.mxu0 0
      %988 = vmatpush.bf16.msra.mxu0 %v960
      %989 = vmatmul.bf16.gmra.mxu0 %v951
      %v990 = vpop.f32.mrf.mxu0
      %v991 = vadd.f32 0.0, %v990
      %v992 = vpop.f32.mrf.mxu0
      %v993 = vadd.f32 0.0, %v992
      %994 = vmatmul.bf16.gmra.mxu0 %v954
      %v995 = vpop.f32.mrf.mxu0
      %v996 = vadd.f32 0.0, %v995
      %v997 = vpop.f32.mrf.mxu0
      %v998 = vadd.f32 0.0, %v997
      %999 = vdwg.mxu0
      %v1000 = vadd.f32 %v889, %v972
      %v1001 = vadd.f32 %v908, %v991
      %v1002 = vadd.f32 %v891, %v974
      %v1003 = vadd.f32 %v910, %v993
      %v1004 = vadd.f32 %v894, %v977
      %v1005 = vadd.f32 %v913, %v996
      %v1006 = vadd.f32 %v896, %v979
      %v1007 = vadd.f32 %v915, %v998
      %v1008 = vsel %vm751, 1, 0
      %v1009 = vsel %vm752, 1, 0
      %vm1010 = vcmp.eq.s32.totalorder %v1008, 1
      %vm1011 = vcmp.eq.s32.totalorder %v1009, 1
      %v1012 = vsel %vm1010, %v1000, 0.0
      %v1013 = vsel %vm1011, %v1001, 0.0
      %v1014 = vsel %vm1010, %v1002, 0.0
      %v1015 = vsel %vm1011, %v1003, 0.0
      %v1016 = vsel %vm1010, %v1004, 0.0
      %v1017 = vsel %vm1011, %v1005, 0.0
      %v1018 = vsel %vm1010, %v1006, 0.0
      %v1019 = vsel %vm1011, %v1007, 0.0
      %v1020 = vadd.f32 %v743, %v1012
      %v1021 = vadd.f32 %v744, %v1013
      %v1022 = vadd.f32 %v745, %v1014
      %v1023 = vadd.f32 %v746, %v1015
      %v1024 = vadd.f32 %v747, %v1016
      %v1025 = vadd.f32 %v748, %v1017
      %v1026 = vadd.f32 %v749, %v1018
      %v1027 = vadd.f32 %v750, %v1019
      %v1028 = vld [vmem:[%s2] sm:$0xff]
      %v1029 = vld [vmem:[%s2 + $0x8] sm:$0xff]
      %v1030 = vld [vmem:[%s2 + $0x10] sm:$0xff]
      %v1031 = vld [vmem:[%s2 + $0x18] sm:$0xff]
      %1033 = vset.pattern.permute.xlu0 0
      %1034 = vperm.xlu0 %1033, %v1028
      %v1035 = vpop.permute.xlu0 %1034
      %1038 = vset.pattern.permute.xlu0 0
      %1039 = vperm.xlu0 %1038, %v1029
      %v1040 = vpop.permute.xlu0 %1039
      %1043 = vset.pattern.permute.xlu0 0
      %1044 = vperm.xlu0 %1043, %v1030
      %v1045 = vpop.permute.xlu0 %1044
      %1048 = vset.pattern.permute.xlu0 0
      %1049 = vperm.xlu0 %1048, %v1031
      %v1050 = vpop.permute.xlu0 %1049
      %v1052 = vadd.f32 %v1020, %v1035
      %v1053 = vadd.f32 %v1021, %v1035
      %v1054 = vadd.f32 %v1022, %v1040
      %v1055 = vadd.f32 %v1023, %v1040
      %v1056 = vadd.f32 %v1024, %v1045
      %v1057 = vadd.f32 %v1025, %v1045
      %v1058 = vadd.f32 %v1026, %v1050
      %v1059 = vadd.f32 %v1027, %v1050
      %v1060 = vld [vmem:[#allocation2] sm:$0xff]
      %v1061 = vld [vmem:[#allocation2 + $0x8] sm:$0xff]
      %v1062 = vld [vmem:[#allocation2 + $0x10] sm:$0xff]
      %v1063 = vld [vmem:[#allocation2 + $0x18] sm:$0xff]
      %v1064 = vld [vmem:[#allocation2 + $0x20] sm:$0xff]
      %v1065 = vld [vmem:[#allocation2 + $0x28] sm:$0xff]
      %v1066 = vld [vmem:[#allocation2 + $0x30] sm:$0xff]
      %v1067 = vld [vmem:[#allocation2 + $0x38] sm:$0xff]
      %v1068 = vadd.f32 %v1060, %v1052
      %v1069 = vadd.f32 %v1061, %v1053
      %v1070 = vadd.f32 %v1062, %v1054
      %v1071 = vadd.f32 %v1063, %v1055
      %v1072 = vadd.f32 %v1064, %v1056
      %v1073 = vadd.f32 %v1065, %v1057
      %v1074 = vadd.f32 %v1066, %v1058
      %v1075 = vadd.f32 %v1067, %v1059
      %1076 = vst [vmem:[#allocation2] sm:$0xff] %v1068
      %1077 = vst [vmem:[#allocation2 + $0x8] sm:$0xff] %v1069
      %1078 = vst [vmem:[#allocation2 + $0x10] sm:$0xff] %v1070
      %1079 = vst [vmem:[#allocation2 + $0x18] sm:$0xff] %v1071
      %1080 = vst [vmem:[#allocation2 + $0x20] sm:$0xff] %v1072
      %1081 = vst [vmem:[#allocation2 + $0x28] sm:$0xff] %v1073
      %1082 = vst [vmem:[#allocation2 + $0x30] sm:$0xff] %v1074
      %1083 = vst [vmem:[#allocation2 + $0x38] sm:$0xff] %v1075
      %v1084 = vld [vmem:[#allocation3] sm:$0xff]
      %v1085 = vld [vmem:[#allocation3 + $0x8] sm:$0xff]
      %v1086 = vld [vmem:[#allocation3 + $0x10] sm:$0xff]
      %v1087 = vld [vmem:[#allocation3 + $0x18] sm:$0xff]
      %v1088 = vld [vmem:[#allocation3 + $0x20] sm:$0xff]
      %v1089 = vld [vmem:[#allocation3 + $0x28] sm:$0xff]
      %v1090 = vld [vmem:[#allocation3 + $0x30] sm:$0xff]
      %v1091 = vld [vmem:[#allocation3 + $0x38] sm:$0xff]
      %v1092 = vmul.f32 %v1052, %v1052
      %v1093 = vmul.f32 %v1053, %v1053
      %v1094 = vmul.f32 %v1054, %v1054
      %v1095 = vmul.f32 %v1055, %v1055
      %v1096 = vmul.f32 %v1056, %v1056
      %v1097 = vmul.f32 %v1057, %v1057
      %v1098 = vmul.f32 %v1058, %v1058
      %v1099 = vmul.f32 %v1059, %v1059
      %v1100 = vadd.f32 %v1084, %v1092
      %v1101 = vadd.f32 %v1085, %v1093
      %v1102 = vadd.f32 %v1086, %v1094
      %v1103 = vadd.f32 %v1087, %v1095
      %v1104 = vadd.f32 %v1088, %v1096
      %v1105 = vadd.f32 %v1089, %v1097
      %v1106 = vadd.f32 %v1090, %v1098
      %v1107 = vadd.f32 %v1091, %v1099
      %1108 = vst [vmem:[#allocation3] sm:$0xff] %v1100
      %1109 = vst [vmem:[#allocation3 + $0x8] sm:$0xff] %v1101
      %1110 = vst [vmem:[#allocation3 + $0x10] sm:$0xff] %v1102
      %1111 = vst [vmem:[#allocation3 + $0x18] sm:$0xff] %v1103
      %1112 = vst [vmem:[#allocation3 + $0x20] sm:$0xff] %v1104
      %1113 = vst [vmem:[#allocation3 + $0x28] sm:$0xff] %v1105
      %1114 = vst [vmem:[#allocation3 + $0x30] sm:$0xff] %v1106
      %1115 = vst [vmem:[#allocation3 + $0x38] sm:$0xff] %v1107
      // Predicated region
      $region37: #{block_forward.2} parent=31 // pred_check
        %p1116 = pneg %p184
      $region38: #{block_forward.2} parent=31 // pred_check_branch
        %1118 = sbr.rel (%p1116) target = $region40
      $region39: #{block_forward.2} parent=31 // pred_region
        %v1119 = vld [vmem:[#allocation2] sm:$0xff]
        %v1120 = vld [vmem:[#allocation2 + $0x8] sm:$0xff]
        %v1121 = vld [vmem:[#allocation2 + $0x10] sm:$0xff]
        %v1122 = vld [vmem:[#allocation2 + $0x18] sm:$0xff]
        %v1123 = vld [vmem:[#allocation2 + $0x20] sm:$0xff]
        %v1124 = vld [vmem:[#allocation2 + $0x28] sm:$0xff]
        %v1125 = vld [vmem:[#allocation2 + $0x30] sm:$0xff]
        %v1126 = vld [vmem:[#allocation2 + $0x38] sm:$0xff]
        %v1127 = vadd.f32 %v1119, %v1120
        %1128 = vadd.xlane.f32.xlu0 %v1127
        %v1129 = vpop.xlane.xlu0 %1128
        %v1130 = vadd.f32 %v1121, %v1122
        %1131 = vadd.xlane.f32.xlu0 %v1130
        %v1132 = vpop.xlane.xlu0 %1131
        %v1133 = vadd.f32 %v1123, %v1124
        %1134 = vadd.xlane.f32.xlu0 %v1133
        %v1135 = vpop.xlane.xlu0 %1134
        %v1136 = vadd.f32 %v1125, %v1126
        %1137 = vadd.xlane.f32.xlu0 %v1136
        %v1138 = vpop.xlane.xlu0 %1137
        %vm1139 = vcmask 7168
        %1140 = vst.msk [vmem:[%s182] sm:$0xff] %vm1139, %v1129
        %1141 = vst.msk [vmem:[%s182 + $0x8] sm:$0xff] %vm1139, %v1132
        %1142 = vst.msk [vmem:[%s182 + $0x10] sm:$0xff] %vm1139, %v1135
        %1143 = vst.msk [vmem:[%s182 + $0x18] sm:$0xff] %vm1139, %v1138
        %v1144 = vld [vmem:[#allocation3] sm:$0xff]
        %v1145 = vld [vmem:[#allocation3 + $0x8] sm:$0xff]
        %v1146 = vld [vmem:[#allocation3 + $0x10] sm:$0xff]
        %v1147 = vld [vmem:[#allocation3 + $0x18] sm:$0xff]
        %v1148 = vld [vmem:[#allocation3 + $0x20] sm:$0xff]
        %v1149 = vld [vmem:[#allocation3 + $0x28] sm:$0xff]
        %v1150 = vld [vmem:[#allocation3 + $0x30] sm:$0xff]
        %v1151 = vld [vmem:[#allocation3 + $0x38] sm:$0xff]
        %v1152 = vadd.f32 %v1144, %v1145
        %1153 = vadd.xlane.f32.xlu0 %v1152
        %v1154 = vpop.xlane.xlu0 %1153
        %v1155 = vadd.f32 %v1146, %v1147
        %1156 = vadd.xlane.f32.xlu0 %v1155
        %v1157 = vpop.xlane.xlu0 %1156
        %v1158 = vadd.f32 %v1148, %v1149
        %1159 = vadd.xlane.f32.xlu0 %v1158
        %v1160 = vpop.xlane.xlu0 %1159
        %v1161 = vadd.f32 %v1150, %v1151
        %1162 = vadd.xlane.f32.xlu0 %v1161
        %v1163 = vpop.xlane.xlu0 %1162
        %vm1164 = vcmask 15368
        %1165 = vst.msk [vmem:[%s182] sm:$0xff] %vm1164, %v1154
        %1166 = vst.msk [vmem:[%s182 + $0x8] sm:$0xff] %vm1164, %v1157
        %1167 = vst.msk [vmem:[%s182 + $0x10] sm:$0xff] %vm1164, %v1160
        %1168 = vst.msk [vmem:[%s182 + $0x18] sm:$0xff] %vm1164, %v1163
      $region40: #{block_forward.2} parent=31 // pred_fallthru
        _
      %p1169 = scmp.lt.s32.totalorder %s18, 1
      %s1170 = scalar_select %p1169, %s18, 1
      %s1171 = smul.addr %s1170, 4
      %s1172 = smul.addr %s1171, 8
      %s1173 = scalar_lea.vmem %s3, %s1172
      // Predicated region
      $region41: #{block_forward.2} parent=31 // pred_check
        %p1174 = pneg %p112
      $region42: #{block_forward.2} parent=31 // pred_check_branch
        %1176 = sbr.rel (%p1174) target = $region44
      $region43: #{block_forward.2} parent=31 // pred_region
        _
      $region44: #{block_forward.2} parent=31 // pred_fallthru
        _
    $region32: #{block_forward.2} parent=5 // pred_fallthru
      _
    %p1177 = scmp.le.s32.totalorder 2, %s9
    // Predicated region
    $region45: #{block_forward.2} parent=5 // pred_check
      %p1178 = pneg %p1177
    $region46: #{block_forward.2} parent=5 // pred_check_branch
      %1180 = sbr.rel (%p1178) target = $region48
    $region47: #{block_forward.2} parent=5 // pred_region
      %s1181 = ssub.s32 %s9, 2
      // Predicated region
      $region49: #{block_forward.2} parent=47 // pred_check
        %p1182 = pneg %p118
      $region50: #{block_forward.2} parent=47 // pred_check_branch
        %1184 = sbr.rel (%p1182) target = $region52
      $region51: #{block_forward.2} parent=47 // pred_region
        %p1185 = scmp.lt.s32.totalorder %s20, 1
        %s1186 = scalar_select %p1185, %s20, 1
        %s1187 = smul.addr %s1186, 4
        %s1188 = smul.addr %s1187, 8
        %s1189 = scalar_lea.vmem %s3, %s1188
      $region52: #{block_forward.2} parent=47 // pred_fallthru
        _
    $region48: #{block_forward.2} parent=5 // pred_fallthru
      _
  $region6: #{block_forward.2} parent=0 // loop_footer
    %s13 = sadd.s32 1, %s9
  $region7: #{block_forward.2} parent=0 // loop_footer_branch
    %8 = sbr.rel target = $region3
  $region8: #{block_forward.2} parent=0 // loop_exit
    _

</llo_original>
